<compile_context>
chip_gen: v5e
topology: v5e:2x2
jax: 0.10.0
libtpu: 0.0.40
codegen_flags: <defaults>
</compile_context>

<pallas_src>
import jax
import jax.numpy as jnp
from jax.experimental import pallas as pl
from jax.experimental.pallas import tpu as pltpu

EMB = 384
H1 = 512
H2 = 256
H_SIG1 = 128          # sigma head first layer width (comes first in fused weight)
H_VA1 = 16            # V_A head first layer width
H_HEAD = H_SIG1 + H_VA1   # 144 = fused head-entry width
N_VA = 2
N_SIG = 51
OUT_W = 128           # lane-dense padded output width (cols 0:2 = V_A, 2:53 = sigma)


def _round_up(a, m):
    return ((a + m - 1) // m) * m


def cosbert_kernel(
    x_ref,                                  # (tm, 384) f32 -> cast to bf16 in kernel
    w1_ref, b1_ref, w2_ref, b2_ref,         # shared layers
    wh1_ref, bh1_ref,                       # fused head entry: [sigma(BN-folded) | V_A] (256, 144)
    wv2_ref, bv2_ref, va_shift_ref,         # V_A head tail (1/std_VA folded into wv2/bv2)
    ws2_ref, bs2_ref, ws3_ref, bs3_ref,     # sigma head tail
    out_ref,                                # (tm, 128) f32, lane-dense single output
):
    x = x_ref[...].astype(jnp.bfloat16)                             # in-kernel f32 -> bf16

    # ---- shared layers: Linear -> (Dropout=id) -> ReLU -> Linear -> (Dropout=id) -> ReLU
    h = jnp.dot(x, w1_ref[...], preferred_element_type=jnp.float32) + b1_ref[...]
    h = jnp.maximum(h, 0.0).astype(jnp.bfloat16)
    h = jnp.dot(h, w2_ref[...], preferred_element_type=jnp.float32) + b2_ref[...]
    h = jnp.maximum(h, 0.0).astype(jnp.bfloat16)                    # (tm, 256)

    # ---- fused head entry: one matmul feeding both heads, ReLU applies to both
    head = jnp.dot(h, wh1_ref[...], preferred_element_type=jnp.float32) + bh1_ref[...]
    head = jnp.maximum(head, 0.0).astype(jnp.bfloat16)              # (tm, 144)
    hs = head[:, :H_SIG1]                                           # (tm, 128) sigma branch
    hv = head[:, H_SIG1:]                                           # (tm, 16)  V_A branch

    # ---- V_A head tail: Linear(16->2) -> LeakyReLU -> subtract mean/std (folded)
    v = jnp.dot(hv, wv2_ref[...], preferred_element_type=jnp.float32) + bv2_ref[...]
    v = jnp.where(v >= 0.0, v, 0.01 * v)            # LeakyReLU(0.01); 1/std already in wv2
    v = v - va_shift_ref[...]                       # (tm, 2) f32

    # ---- sigma head tail: Linear(128->64) -> ReLU -> Linear(64->51) -> LeakyReLU -> normalize
    s = jnp.dot(hs, ws2_ref[...], preferred_element_type=jnp.float32) + bs2_ref[...]
    s = jnp.maximum(s, 0.0).astype(jnp.bfloat16)
    s = jnp.dot(s, ws3_ref[...], preferred_element_type=jnp.float32) + bs3_ref[...]
    s = jnp.where(s >= 0.0, s, 0.01 * s)
    ssum = jnp.sum(s, axis=1, keepdims=True) + 1e-8
    s = s * pl.reciprocal(ssum, approx=True)        # (tm, 51) f32

    # ---- single lane-dense store: [V_A(2) | sigma(51) | zero pad(75)]
    zpad = jnp.zeros((v.shape[0], OUT_W - (N_VA + N_SIG)), jnp.float32)
    out_ref[...] = jnp.concatenate([v, s, zpad], axis=-1)


def cosbert_forward(x, params, *, tm=512):
    """x: [B, 384] float32; params: prepared params (see prepare_params).

    tm: batch-row tile.  Clamped so (a) it is sublane-friendly (multiple of 16,
    128 for large batches) and (b) the grid has >= 2 steps whenever B allows,
    so the "parallel" batch axis shards across TensorCores on v7x.  Weights are
    DMA'd once (constant index_map) and stay VMEM-resident across the grid.
    """
    B = x.shape[0]
    x = x.astype(jnp.float32)          # kernel does the f32 -> bf16 cast internally

    align = 128 if B >= 256 else 16
    cap = _round_up(max(pl.cdiv(B, 2), 1), align)     # >= 2 grid steps when possible
    tm = max(align, min(_round_up(int(tm), align), cap))
    Bp = _round_up(B, tm)
    if Bp != B:
        x = jnp.pad(x, ((0, Bp - B), (0, 0)))

    grid = (Bp // tm,)
    row_block = lambda i: (i, 0)       # tile over batch rows
    const_block = lambda i: (0, 0)     # weights: same block every step -> loaded once

    in_specs = [pl.BlockSpec((tm, EMB), row_block)] + [
        pl.BlockSpec(p.shape, const_block) for p in params
    ]
    out_specs = pl.BlockSpec((tm, OUT_W), row_block)
    out_shape = jax.ShapeDtypeStruct((Bp, OUT_W), jnp.float32)

    out = pl.pallas_call(
        cosbert_kernel,
        grid=grid,
        in_specs=in_specs,
        out_specs=out_specs,
        out_shape=out_shape,
        compiler_params=pltpu.CompilerParams(
            dimension_semantics=("parallel",),   # megacore sharding on v7x
        ),
    )(x, *params)

    # cols 0:2 = V_A, 2:53 = sigma -> exactly torch.cat((V_A, sigma), dim=1)
    return out[:B, : N_VA + N_SIG]


def _linear_params(key, fan_in, fan_out):
    """Deterministic init mimicking torch Linear (uniform +-1/sqrt(fan_in)).
    Weight returned already transposed to [in, out]; bias as [1, out]."""
    kw, kb = jax.random.split(key)
    bound = 1.0 / jnp.sqrt(fan_in)
    w = jax.random.uniform(kw, (fan_in, fan_out), jnp.float32, -bound, bound)
    b = jax.random.uniform(kb, (1, fan_out), jnp.float32, -bound, bound)
    return w, b


def init_raw_params(key):
    """Un-folded f32 parameters (weights pre-transposed to [in, out])."""
    keys = jax.random.split(key, 8)
    w1, b1 = _linear_params(keys[0], EMB, H1)
    w2, b2 = _linear_params(keys[1], H1, H2)
    wv1, bv1 = _linear_params(keys[2], H2, H_VA1)
    wv2, bv2 = _linear_params(keys[3], H_VA1, N_VA)
    mean_va = jnp.array([[0.5, -0.25]], dtype=jnp.float32)
    std_va = jnp.array([[1.5, 2.0]], dtype=jnp.float32)
    ws1, bs1 = _linear_params(keys[4], H2, H_SIG1)
    # BatchNorm1d(128) eval mode, default init: gamma=1, beta=0, mean=0, var=1, eps=1e-5
    gamma = jnp.ones((1, H_SIG1), jnp.float32)
    beta = jnp.zeros((1, H_SIG1), jnp.float32)
    running_mean = jnp.zeros((1, H_SIG1), jnp.float32)
    running_var = jnp.ones((1, H_SIG1), jnp.float32)
    ws2, bs2 = _linear_params(keys[5], H_SIG1, 64)
    ws3, bs3 = _linear_params(keys[6], 64, N_SIG)
    return dict(
        w1=w1, b1=b1, w2=w2, b2=b2,
        wv1=wv1, bv1=bv1, wv2=wv2, bv2=bv2,
        mean_va=mean_va, std_va=std_va,
        ws1=ws1, bs1=bs1,
        gamma=gamma, beta=beta, running_mean=running_mean, running_var=running_var,
        bn_eps=1e-5,
        ws2=ws2, bs2=bs2, ws3=ws3, bs3=bs3,
    )


def prepare_params(raw):
    """Fold BN (eval) into ws1/bs1, fold 1/std_VA into wv2/bv2, fuse the two
    head-entry matmuls ([sigma | V_A] column order so the split is 128-aligned),
    and cast all matmul operands to bf16.  Biases / VA shift constant stay f32."""
    # BatchNorm eval: y = x * bn_scale + bn_shift  ->  fold into preceding Linear.
    bn_scale = raw["gamma"] / jnp.sqrt(raw["running_var"] + raw["bn_eps"])   # (1,128)
    bn_shift = raw["beta"] - raw["running_mean"] * bn_scale
    ws1_f = raw["ws1"] * bn_scale
    bs1_f = raw["bs1"] * bn_scale + bn_shift

    # LeakyReLU commutes with a positive per-channel scale (std_VA > 0), so
    # (leaky(v @ wv2 + bv2) - mean) / std == leaky(v @ (wv2/std) + bv2/std) - mean/std.
    inv_std = 1.0 / raw["std_va"]
    wv2_f = raw["wv2"] * inv_std
    bv2_f = raw["bv2"] * inv_std
    va_shift = raw["mean_va"] * inv_std

    # Fuse the two head-entry matmuls that share h: cols 0:128 sigma, 128:144 V_A.
    wh1 = jnp.concatenate([ws1_f, raw["wv1"]], axis=1)     # (256, 144)
    bh1 = jnp.concatenate([bs1_f, raw["bv1"]], axis=1)     # (1, 144)

    bf16 = lambda a: a.astype(jnp.bfloat16)
    return [
        bf16(raw["w1"]), raw["b1"], bf16(raw["w2"]), raw["b2"],
        bf16(wh1), bh1,
        bf16(wv2_f), bv2_f, va_shift,
        bf16(raw["ws2"]), raw["bs2"], bf16(raw["ws3"]), raw["bs3"],
    ]


def reference_forward(x, params):
    """Pure-JAX mirror of the kernel math (same folded/fused bf16 params, exact divide)."""
    (w1, b1, w2, b2, wh1, bh1, wv2, bv2, va_shift, ws2, bs2, ws3, bs3) = params
    f32 = jnp.float32
    xb = x.astype(jnp.bfloat16)
    h = jnp.maximum(jnp.dot(xb, w1, preferred_element_type=f32) + b1, 0.0).astype(jnp.bfloat16)
    h = jnp.maximum(jnp.dot(h, w2, preferred_element_type=f32) + b2, 0.0).astype(jnp.bfloat16)
    head = jnp.maximum(jnp.dot(h, wh1, preferred_element_type=f32) + bh1, 0.0).astype(jnp.bfloat16)
    hs, hv = head[:, :H_SIG1], head[:, H_SIG1:]
    v = jnp.dot(hv, wv2, preferred_element_type=f32) + bv2
    v = jnp.where(v >= 0, v, 0.01 * v) - va_shift
    s = jnp.maximum(jnp.dot(hs, ws2, preferred_element_type=f32) + bs2, 0.0).astype(jnp.bfloat16)
    s = jnp.dot(s, ws3, preferred_element_type=f32) + bs3
    s = jnp.where(s >= 0, s, 0.01 * s)
    s = s / (jnp.sum(s, axis=1, keepdims=True) + 1e-8)
    return jnp.concatenate([v, s], axis=1)


if __name__ == "__main__":
    key = jax.random.PRNGKey(0)
    k_x, k_p = jax.random.split(key)

    B = 32  # small batch; tm clamps to 16 -> 2-step grid (exercises pipelining / megacore path)
    x = jax.random.normal(k_x, (B, EMB), dtype=jnp.float32)
    raw = init_raw_params(k_p)
    params = prepare_params(raw)

    out = cosbert_forward(x, params)
    out = jax.block_until_ready(out)

    ref = reference_forward(x, params)
    assert out.shape == (B, N_VA + N_SIG), out.shape
    # bf16 matmuls + approx reciprocal -> compare against the bf16 mirror at 1e-2
    assert jnp.allclose(out, ref, atol=1e-2, rtol=1e-2), "mismatch vs reference"

    print("KERNEL_OK")
</pallas_src>

<mosaic_0001>
module attributes {stable_mosaic.version = 11 : i64} {
  func.func @cosbert_kernel(%arg0: i32, %arg1: memref<16x384xf32, #tpu.memory_space<vmem>>, %arg2: memref<384x512xbf16, #tpu.memory_space<vmem>>, %arg3: memref<1x512xf32, #tpu.memory_space<vmem>>, %arg4: memref<512x256xbf16, #tpu.memory_space<vmem>>, %arg5: memref<1x256xf32, #tpu.memory_space<vmem>>, %arg6: memref<256x144xbf16, #tpu.memory_space<vmem>>, %arg7: memref<1x144xf32, #tpu.memory_space<vmem>>, %arg8: memref<16x2xbf16, #tpu.memory_space<vmem>>, %arg9: memref<1x2xf32, #tpu.memory_space<vmem>>, %arg10: memref<1x2xf32, #tpu.memory_space<vmem>>, %arg11: memref<128x64xbf16, #tpu.memory_space<vmem>>, %arg12: memref<1x64xf32, #tpu.memory_space<vmem>>, %arg13: memref<64x51xbf16, #tpu.memory_space<vmem>>, %arg14: memref<1x51xf32, #tpu.memory_space<vmem>>, %arg15: memref<16x128xf32, #tpu.memory_space<vmem>>) attributes {dimension_semantics = [#tpu.dimension_semantics<parallel>], iteration_bounds = array<i64: 2>, scalar_prefetch = 0 : i64, scratch_operands = 0 : i64, tpu.core_type = #tpu.core_type<tc>, window_params = [{transform_indices = @transform_0, window_bounds = array<i64: 16, 384>}, {pipeline_mode = #tpu.pipeline_mode<synchronous>, transform_indices = @transform_1, window_bounds = array<i64: 384, 512>}, {pipeline_mode = #tpu.pipeline_mode<synchronous>, transform_indices = @transform_2, window_bounds = array<i64: 1, 512>}, {pipeline_mode = #tpu.pipeline_mode<synchronous>, transform_indices = @transform_3, window_bounds = array<i64: 512, 256>}, {pipeline_mode = #tpu.pipeline_mode<synchronous>, transform_indices = @transform_4, window_bounds = array<i64: 1, 256>}, {pipeline_mode = #tpu.pipeline_mode<synchronous>, transform_indices = @transform_5, window_bounds = array<i64: 256, 144>}, {pipeline_mode = #tpu.pipeline_mode<synchronous>, transform_indices = @transform_6, window_bounds = array<i64: 1, 144>}, {pipeline_mode = #tpu.pipeline_mode<synchronous>, transform_indices = @transform_7, window_bounds = array<i64: 16, 2>}, {pipeline_mode = #tpu.pipeline_mode<synchronous>, transform_indices = @transform_8, window_bounds = array<i64: 1, 2>}, {pipeline_mode = #tpu.pipeline_mode<synchronous>, transform_indices = @transform_9, window_bounds = array<i64: 1, 2>}, {pipeline_mode = #tpu.pipeline_mode<synchronous>, transform_indices = @transform_10, window_bounds = array<i64: 128, 64>}, {pipeline_mode = #tpu.pipeline_mode<synchronous>, transform_indices = @transform_11, window_bounds = array<i64: 1, 64>}, {pipeline_mode = #tpu.pipeline_mode<synchronous>, transform_indices = @transform_12, window_bounds = array<i64: 64, 51>}, {pipeline_mode = #tpu.pipeline_mode<synchronous>, transform_indices = @transform_13, window_bounds = array<i64: 1, 51>}, {transform_indices = @transform_14, window_bounds = array<i64: 16, 128>}]} {
    %c0 = arith.constant 0 : index
    %c0_0 = arith.constant 0 : index
    %0 = vector.load %arg1[%c0, %c0_0] : memref<16x384xf32, #tpu.memory_space<vmem>>, vector<16x384xf32>
    %1 = arith.truncf %0 : vector<16x384xf32> to vector<16x384xbf16>
    %c0_1 = arith.constant 0 : index
    %c0_2 = arith.constant 0 : index
    %2 = vector.load %arg2[%c0_1, %c0_2] : memref<384x512xbf16, #tpu.memory_space<vmem>>, vector<384x512xbf16>
    %cst = arith.constant dense<0.000000e+00> : vector<16x512xf32>
    %3 = tpu.matmul %1, %2, %cst {dimension_numbers = #tpu.dot_dimension_numbers<[1], [0], [0], [1], [0, 0, 1, 1], [], []>} : vector<16x384xbf16>, vector<384x512xbf16>, vector<16x512xf32> -> vector<16x512xf32>
    %c0_3 = arith.constant 0 : index
    %c0_4 = arith.constant 0 : index
    %4 = vector.load %arg3[%c0_3, %c0_4] : memref<1x512xf32, #tpu.memory_space<vmem>>, vector<1x512xf32>
    %5 = vector.broadcast %4 : vector<1x512xf32> to vector<16x512xf32>
    %6 = arith.addf %3, %5 : vector<16x512xf32>
    %cst_5 = arith.constant 0.000000e+00 : f32
    %7 = vector.broadcast %cst_5 : f32 to vector<16x512xf32>
    %8 = arith.maximumf %6, %7 : vector<16x512xf32>
    %9 = arith.truncf %8 : vector<16x512xf32> to vector<16x512xbf16>
    %c0_6 = arith.constant 0 : index
    %c0_7 = arith.constant 0 : index
    %10 = vector.load %arg4[%c0_6, %c0_7] : memref<512x256xbf16, #tpu.memory_space<vmem>>, vector<512x256xbf16>
    %cst_8 = arith.constant dense<0.000000e+00> : vector<16x256xf32>
    %11 = tpu.matmul %9, %10, %cst_8 {dimension_numbers = #tpu.dot_dimension_numbers<[1], [0], [0], [1], [0, 0, 1, 1], [], []>} : vector<16x512xbf16>, vector<512x256xbf16>, vector<16x256xf32> -> vector<16x256xf32>
    %c0_9 = arith.constant 0 : index
    %c0_10 = arith.constant 0 : index
    %12 = vector.load %arg5[%c0_9, %c0_10] : memref<1x256xf32, #tpu.memory_space<vmem>>, vector<1x256xf32>
    %13 = vector.broadcast %12 : vector<1x256xf32> to vector<16x256xf32>
    %14 = arith.addf %11, %13 : vector<16x256xf32>
    %cst_11 = arith.constant 0.000000e+00 : f32
    %15 = vector.broadcast %cst_11 : f32 to vector<16x256xf32>
    %16 = arith.maximumf %14, %15 : vector<16x256xf32>
    %17 = arith.truncf %16 : vector<16x256xf32> to vector<16x256xbf16>
    %c0_12 = arith.constant 0 : index
    %c0_13 = arith.constant 0 : index
    %18 = vector.load %arg6[%c0_12, %c0_13] : memref<256x144xbf16, #tpu.memory_space<vmem>>, vector<256x144xbf16>
    %cst_14 = arith.constant dense<0.000000e+00> : vector<16x144xf32>
    %19 = tpu.matmul %17, %18, %cst_14 {dimension_numbers = #tpu.dot_dimension_numbers<[1], [0], [0], [1], [0, 0, 1, 1], [], []>} : vector<16x256xbf16>, vector<256x144xbf16>, vector<16x144xf32> -> vector<16x144xf32>
    %c0_15 = arith.constant 0 : index
    %c0_16 = arith.constant 0 : index
    %20 = vector.load %arg7[%c0_15, %c0_16] : memref<1x144xf32, #tpu.memory_space<vmem>>, vector<1x144xf32>
    %21 = vector.broadcast %20 : vector<1x144xf32> to vector<16x144xf32>
    %22 = arith.addf %19, %21 : vector<16x144xf32>
    %cst_17 = arith.constant 0.000000e+00 : f32
    %23 = vector.broadcast %cst_17 : f32 to vector<16x144xf32>
    %24 = arith.maximumf %22, %23 : vector<16x144xf32>
    %25 = arith.truncf %24 : vector<16x144xf32> to vector<16x144xbf16>
    %26 = vector.extract_strided_slice %25 {offsets = [0, 0], sizes = [16, 128], strides = [1, 1]} : vector<16x144xbf16> to vector<16x128xbf16>
    %27 = vector.extract_strided_slice %25 {offsets = [0, 128], sizes = [16, 16], strides = [1, 1]} : vector<16x144xbf16> to vector<16x16xbf16>
    %c0_18 = arith.constant 0 : index
    %c0_19 = arith.constant 0 : index
    %28 = vector.load %arg8[%c0_18, %c0_19] : memref<16x2xbf16, #tpu.memory_space<vmem>>, vector<16x2xbf16>
    %cst_20 = arith.constant dense<0.000000e+00> : vector<16x2xf32>
    %29 = tpu.matmul %27, %28, %cst_20 {dimension_numbers = #tpu.dot_dimension_numbers<[1], [0], [0], [1], [0, 0, 1, 1], [], []>} : vector<16x16xbf16>, vector<16x2xbf16>, vector<16x2xf32> -> vector<16x2xf32>
    %c0_21 = arith.constant 0 : index
    %c0_22 = arith.constant 0 : index
    %30 = vector.load %arg9[%c0_21, %c0_22] : memref<1x2xf32, #tpu.memory_space<vmem>>, vector<1x2xf32>
    %31 = vector.broadcast %30 : vector<1x2xf32> to vector<16x2xf32>
    %32 = arith.addf %29, %31 : vector<16x2xf32>
    %cst_23 = arith.constant 0.000000e+00 : f32
    %33 = vector.broadcast %cst_23 : f32 to vector<16x2xf32>
    %34 = arith.cmpf oge, %32, %33 : vector<16x2xf32>
    %cst_24 = arith.constant 0.00999999977 : f32
    %35 = vector.broadcast %cst_24 : f32 to vector<16x2xf32>
    %36 = arith.mulf %35, %32 : vector<16x2xf32>
    %37 = arith.select %34, %32, %36 : vector<16x2xi1>, vector<16x2xf32>
    %c0_25 = arith.constant 0 : index
    %c0_26 = arith.constant 0 : index
    %38 = vector.load %arg10[%c0_25, %c0_26] : memref<1x2xf32, #tpu.memory_space<vmem>>, vector<1x2xf32>
    %39 = vector.broadcast %38 : vector<1x2xf32> to vector<16x2xf32>
    %40 = arith.subf %37, %39 : vector<16x2xf32>
    %c0_27 = arith.constant 0 : index
    %c0_28 = arith.constant 0 : index
    %41 = vector.load %arg11[%c0_27, %c0_28] : memref<128x64xbf16, #tpu.memory_space<vmem>>, vector<128x64xbf16>
    %cst_29 = arith.constant dense<0.000000e+00> : vector<16x64xf32>
    %42 = tpu.matmul %26, %41, %cst_29 {dimension_numbers = #tpu.dot_dimension_numbers<[1], [0], [0], [1], [0, 0, 1, 1], [], []>} : vector<16x128xbf16>, vector<128x64xbf16>, vector<16x64xf32> -> vector<16x64xf32>
    %c0_30 = arith.constant 0 : index
    %c0_31 = arith.constant 0 : index
    %43 = vector.load %arg12[%c0_30, %c0_31] : memref<1x64xf32, #tpu.memory_space<vmem>>, vector<1x64xf32>
    %44 = vector.broadcast %43 : vector<1x64xf32> to vector<16x64xf32>
    %45 = arith.addf %42, %44 : vector<16x64xf32>
    %cst_32 = arith.constant 0.000000e+00 : f32
    %46 = vector.broadcast %cst_32 : f32 to vector<16x64xf32>
    %47 = arith.maximumf %45, %46 : vector<16x64xf32>
    %48 = arith.truncf %47 : vector<16x64xf32> to vector<16x64xbf16>
    %c0_33 = arith.constant 0 : index
    %c0_34 = arith.constant 0 : index
    %49 = vector.load %arg13[%c0_33, %c0_34] : memref<64x51xbf16, #tpu.memory_space<vmem>>, vector<64x51xbf16>
    %cst_35 = arith.constant dense<0.000000e+00> : vector<16x51xf32>
    %50 = tpu.matmul %48, %49, %cst_35 {dimension_numbers = #tpu.dot_dimension_numbers<[1], [0], [0], [1], [0, 0, 1, 1], [], []>} : vector<16x64xbf16>, vector<64x51xbf16>, vector<16x51xf32> -> vector<16x51xf32>
    %c0_36 = arith.constant 0 : index
    %c0_37 = arith.constant 0 : index
    %51 = vector.load %arg14[%c0_36, %c0_37] : memref<1x51xf32, #tpu.memory_space<vmem>>, vector<1x51xf32>
    %52 = vector.broadcast %51 : vector<1x51xf32> to vector<16x51xf32>
    %53 = arith.addf %50, %52 : vector<16x51xf32>
    %cst_38 = arith.constant 0.000000e+00 : f32
    %54 = vector.broadcast %cst_38 : f32 to vector<16x51xf32>
    %55 = arith.cmpf oge, %53, %54 : vector<16x51xf32>
    %cst_39 = arith.constant 0.00999999977 : f32
    %56 = vector.broadcast %cst_39 : f32 to vector<16x51xf32>
    %57 = arith.mulf %56, %53 : vector<16x51xf32>
    %58 = arith.select %55, %53, %57 : vector<16x51xi1>, vector<16x51xf32>
    %cst_40 = arith.constant dense<0.000000e+00> : vector<16xf32>
    %59 = vector.multi_reduction <add>, %58, %cst_40 [1] : vector<16x51xf32> to vector<16xf32>
    %60 = vector.shape_cast %59 : vector<16xf32> to vector<16x1xf32>
    %cst_41 = arith.constant 9.99999993E-9 : f32
    %61 = vector.broadcast %cst_41 : f32 to vector<16x1xf32>
    %62 = arith.addf %60, %61 : vector<16x1xf32>
    %63 = tpu.reciprocal %62 {approx = true} : vector<16x1xf32> -> vector<16x1xf32>
    %64 = vector.broadcast %63 : vector<16x1xf32> to vector<16x51xf32>
    %65 = arith.mulf %58, %64 : vector<16x51xf32>
    %cst_42 = arith.constant 0.000000e+00 : f32
    %66 = vector.broadcast %cst_42 : f32 to vector<16x75xf32>
    %67 = tpu.concatenate %40, %65, %66 in 1 : vector<16x2xf32>, vector<16x51xf32>, vector<16x75xf32> -> vector<16x128xf32>
    %c0_43 = arith.constant 0 : index
    %c0_44 = arith.constant 0 : index
    %68 = vector.load %arg15[%c0_43, %c0_44] : memref<16x128xf32, #tpu.memory_space<vmem>>, vector<16x128xf32>
    tpu.vector_store %arg15[%c0_43, %c0_44], %67 {strides = array<i32>} : memref<16x128xf32, #tpu.memory_space<vmem>>, vector<16x128xf32>,
    return
  }
  func.func @transform_0(%arg0: i32) -> (i32, i32) {
    %c0_i32 = arith.constant 0 : i32
    %c0_i32_0 = arith.constant 0 : i32
    return %arg0, %c0_i32 : i32, i32
  }
  func.func @transform_1(%arg0: i32) -> (i32, i32) {
    %c0_i32 = arith.constant 0 : i32
    %c0_i32_0 = arith.constant 0 : i32
    %c0_i32_1 = arith.constant 0 : i32
    return %c0_i32, %c0_i32_0 : i32, i32
  }
  func.func @transform_2(%arg0: i32) -> (i32, i32) {
    %c0_i32 = arith.constant 0 : i32
    %c0_i32_0 = arith.constant 0 : i32
    %c0_i32_1 = arith.constant 0 : i32
    return %c0_i32, %c0_i32_0 : i32, i32
  }
  func.func @transform_3(%arg0: i32) -> (i32, i32) {
    %c0_i32 = arith.constant 0 : i32
    %c0_i32_0 = arith.constant 0 : i32
    %c0_i32_1 = arith.constant 0 : i32
    return %c0_i32, %c0_i32_0 : i32, i32
  }
  func.func @transform_4(%arg0: i32) -> (i32, i32) {
    %c0_i32 = arith.constant 0 : i32
    %c0_i32_0 = arith.constant 0 : i32
    %c0_i32_1 = arith.constant 0 : i32
    return %c0_i32, %c0_i32_0 : i32, i32
  }
  func.func @transform_5(%arg0: i32) -> (i32, i32) {
    %c0_i32 = arith.constant 0 : i32
    %c0_i32_0 = arith.constant 0 : i32
    %c0_i32_1 = arith.constant 0 : i32
    return %c0_i32, %c0_i32_0 : i32, i32
  }
  func.func @transform_6(%arg0: i32) -> (i32, i32) {
    %c0_i32 = arith.constant 0 : i32
    %c0_i32_0 = arith.constant 0 : i32
    %c0_i32_1 = arith.constant 0 : i32
    return %c0_i32, %c0_i32_0 : i32, i32
  }
  func.func @transform_7(%arg0: i32) -> (i32, i32) {
    %c0_i32 = arith.constant 0 : i32
    %c0_i32_0 = arith.constant 0 : i32
    %c0_i32_1 = arith.constant 0 : i32
    return %c0_i32, %c0_i32_0 : i32, i32
  }
  func.func @transform_8(%arg0: i32) -> (i32, i32) {
    %c0_i32 = arith.constant 0 : i32
    %c0_i32_0 = arith.constant 0 : i32
    %c0_i32_1 = arith.constant 0 : i32
    return %c0_i32, %c0_i32_0 : i32, i32
  }
  func.func @transform_9(%arg0: i32) -> (i32, i32) {
    %c0_i32 = arith.constant 0 : i32
    %c0_i32_0 = arith.constant 0 : i32
    %c0_i32_1 = arith.constant 0 : i32
    return %c0_i32, %c0_i32_0 : i32, i32
  }
  func.func @transform_10(%arg0: i32) -> (i32, i32) {
    %c0_i32 = arith.constant 0 : i32
    %c0_i32_0 = arith.constant 0 : i32
    %c0_i32_1 = arith.constant 0 : i32
    return %c0_i32, %c0_i32_0 : i32, i32
  }
  func.func @transform_11(%arg0: i32) -> (i32, i32) {
    %c0_i32 = arith.constant 0 : i32
    %c0_i32_0 = arith.constant 0 : i32
    %c0_i32_1 = arith.constant 0 : i32
    return %c0_i32, %c0_i32_0 : i32, i32
  }
  func.func @transform_12(%arg0: i32) -> (i32, i32) {
    %c0_i32 = arith.constant 0 : i32
    %c0_i32_0 = arith.constant 0 : i32
    %c0_i32_1 = arith.constant 0 : i32
    return %c0_i32, %c0_i32_0 : i32, i32
  }
  func.func @transform_13(%arg0: i32) -> (i32, i32) {
    %c0_i32 = arith.constant 0 : i32
    %c0_i32_0 = arith.constant 0 : i32
    %c0_i32_1 = arith.constant 0 : i32
    return %c0_i32, %c0_i32_0 : i32, i32
  }
  func.func @transform_14(%arg0: i32) -> (i32, i32) {
    %c0_i32 = arith.constant 0 : i32
    %c0_i32_0 = arith.constant 0 : i32
    return %arg0, %c0_i32 : i32, i32
  }
}

</mosaic_0001>

<llo_original>
// kernel: tpu_custom_call.1
$region0: #{tpu_custom_call.1}
  #allocation0 [shape = 'u32[]', space=smem, size = 0x4, offset = 0x4, fixed_abs, tag = 'smem constant byte address 0x4 - core index']
  #allocation1 [shape = 'u32[72,128]{1,0:T(1,128)}', space=vmem, size = 0x9000, scoped, tag = 'internal scratch']
  %s0 = inlined_call_operand.vmem [shape: f32[32,384], index: 0, kind: input, shape index: {}]
  %s1 = inlined_call_operand.hbm [shape: bf16[384,512], index: 1, kind: input, shape index: {}]
  %s2 = inlined_call_operand.vmem [shape: f32[1,512], index: 2, kind: input, shape index: {}]
  %s3 = inlined_call_operand.hbm [shape: bf16[512,256], index: 3, kind: input, shape index: {}]
  %s4 = inlined_call_operand.vmem [shape: f32[1,256], index: 4, kind: input, shape index: {}]
  %s5 = inlined_call_operand.vmem [shape: bf16[256,144], index: 5, kind: input, shape index: {}]
  %s6 = inlined_call_operand.vmem [shape: f32[1,144], index: 6, kind: input, shape index: {}]
  %s7 = inlined_call_operand.vmem [shape: bf16[16,2], index: 7, kind: input, shape index: {}]
  %s8 = inlined_call_operand.vmem [shape: f32[1,2], index: 8, kind: input, shape index: {}]
  %s9 = inlined_call_operand.vmem [shape: f32[1,2], index: 9, kind: input, shape index: {}]
  %s10 = inlined_call_operand.vmem [shape: bf16[128,64], index: 10, kind: input, shape index: {}]
  %s11 = inlined_call_operand.vmem [shape: f32[1,64], index: 11, kind: input, shape index: {}]
  %s12 = inlined_call_operand.vmem [shape: bf16[64,51], index: 12, kind: input, shape index: {}]
  %s13 = inlined_call_operand.vmem [shape: f32[1,51], index: 13, kind: input, shape index: {}]
  %s14 = inlined_call_operand.hbm [shape: f32[32,128], index: 14, kind: output, shape index: {}]
  %s15 = sld [smem:[#allocation0]]
  $region97: #{tpu_custom_call.1} parent=0
    _
  %s17 = ssub.s32 1, %s15
  %s18 = scalar_select 0, %s17, %s15
  $region1: #{tpu_custom_call.1} parent=0
    #allocation2 [shape = 'u8[393216]{0}', space=vmem, size = 0x60000, scoped, tag = 'input window, operand 1, single buffered']
    #allocation3 [shape = 's32[2]{0}', space=sflag, size = 0x8, scoped, tag = 'scoped memory for tpu_custom_call.1']
    #allocation4 [shape = 's32[2]{0}', space=sflag, size = 0x8, scoped, tag = 'scoped memory for tpu_custom_call.1']
    #allocation5 [shape = 'u8[262144]{0}', space=vmem, size = 0x40000, scoped, tag = 'input window, operand 3, single buffered']
    #allocation6 [shape = 's32[1]{0}', space=sflag, size = 0x4, scoped, tag = 'scoped memory for tpu_custom_call.1']
    #allocation7 [shape = 'u8[16384]{0}', space=vmem, size = 0x4000, scoped, tag = 'output window, operand 0']
    %19 = vsyncpa [#allocation3], 0
    %20 = vsyncpa [#allocation6], 0
    %21 = vsyncpa [#allocation4], 0
    %s22 = scalar_lea.sflag [#allocation4], 1
    %23 = vsyncpa %s22, 0
    loop: start=0, step=1, limit=4
    $region2: #{tpu_custom_call.1} parent=1 // loop_pre_header
      _
    $region3: #{tpu_custom_call.1} parent=1 // loop_header
      %s25 = sphi 0, %s29
      %p26 = scmp.ge.s32.totalorder %s25, 4
      %s35 = sphi 0, %s37
      %s38 = sphi 0, %s35
      %s39 = sphi 0, %s38
      %s55 = sphi 0, %s39
      %s59 = sphi 0, %s59
      %s61 = sphi 0, %s59
      %s62 = sphi 0, %s61
      %s76 = sphi 0, %s62
      %s80 = sphi 0, %s80
      %s82 = sphi 0, %s80
      %s83 = sphi 0, %s82
      %s97 = sphi 0, %s83
      %s101 = sphi 0, %s101
      %s103 = sphi 0, %s101
      %s104 = sphi 0, %s103
      %s118 = sphi 0, %s104
      %s122 = sphi 0, %s122
      %s124 = sphi 0, %s122
      %s125 = sphi 0, %s124
      %s139 = sphi 0, %s125
      %s143 = sphi 0, %s143
      %s145 = sphi 0, %s143
      %s146 = sphi 0, %s145
      %s160 = sphi 0, %s146
      %s164 = sphi 0, %s164
      %s166 = sphi 0, %s164
      %s167 = sphi 0, %s166
      %s181 = sphi 0, %s167
      %s185 = sphi 0, %s185
      %s187 = sphi 0, %s185
      %s188 = sphi 0, %s187
      %s202 = sphi 0, %s188
      %s206 = sphi 0, %s206
      %s208 = sphi 0, %s206
      %s209 = sphi 0, %s208
      %s223 = sphi 0, %s209
      %s227 = sphi 0, %s227
      %s229 = sphi 0, %s227
      %s230 = sphi 0, %s229
      %s244 = sphi 0, %s230
      %s248 = sphi 0, %s248
      %s250 = sphi 0, %s248
      %s251 = sphi 0, %s250
      %s265 = sphi 0, %s251
      %s269 = sphi 0, %s269
      %s271 = sphi 0, %s269
      %s272 = sphi 0, %s271
      %s286 = sphi 0, %s272
      %s290 = sphi 0, %s290
      %s292 = sphi 0, %s290
      %s293 = sphi 0, %s292
      %s307 = sphi 0, %s293
      %s311 = sphi 0, %s311
      %s313 = sphi 0, %s311
      %s314 = sphi 0, %s313
      %s328 = sphi 0, %s314
      %s334 = sphi 0, %s336
      %s337 = sphi 0, %s334
      %s338 = sphi 0, %s337
      %s354 = sphi 0, %s338
    $region4: #{tpu_custom_call.1} parent=1 // loop_header_branch
      %28 = sbr.rel (%p26) target = $region8
    $region5: #{tpu_custom_call.1} parent=1 // loop_body
      %s30 = ssub.s32 %s25, 1
      %s31 = ssub.s32 %s25, 2
      %s32 = sadd.s32 %s25, 1
      %s33 = ssub.s32 %s25, %s32
      %p34 = scmp.eq.s32.totalorder %s33, 0
      %s36 = sadd.s32 %s35, 1
      %s37 = scalar_select %p34, %s35, %s36
      %p40 = pneg %p34
      %p41 = scmp.eq.s32.totalorder %s25, 1
      %p42 = por %p40, %p41
      %p43 = scmp.ne.s32.totalorder %s35, %s38
      %p44 = scmp.eq.s32.totalorder %s25, 0
      %p45 = por %p43, %p44
      %p46 = scmp.ne.s32.totalorder %s35, %s38
      %p47 = scmp.eq.s32.totalorder %s30, 1
      %p48 = por %p46, %p47
      %p49 = scmp.ne.s32.totalorder %s38, %s39
      %p50 = scmp.eq.s32.totalorder %s30, 0
      %p51 = por %p49, %p50
      %p52 = scmp.ne.s32.totalorder %s38, %s39
      %p53 = scmp.eq.s32.totalorder %s31, 1
      %p54 = por %p52, %p53
      %p56 = scmp.ne.s32.totalorder %s39, %s55
      %p57 = scmp.eq.s32.totalorder %s31, 0
      %p58 = por %p56, %p57
      %s60 = sadd.s32 %s59, 1
      %p63 = scmp.eq.s32.totalorder %s25, 1
      %p64 = scmp.ne.s32.totalorder %s59, %s61
      %p65 = scmp.eq.s32.totalorder %s25, 0
      %p66 = por %p64, %p65
      %p67 = scmp.ne.s32.totalorder %s59, %s61
      %p68 = scmp.eq.s32.totalorder %s30, 1
      %p69 = por %p67, %p68
      %p70 = scmp.ne.s32.totalorder %s61, %s62
      %p71 = scmp.eq.s32.totalorder %s30, 0
      %p72 = por %p70, %p71
      %p73 = scmp.ne.s32.totalorder %s61, %s62
      %p74 = scmp.eq.s32.totalorder %s31, 1
      %p75 = por %p73, %p74
      %p77 = scmp.ne.s32.totalorder %s62, %s76
      %p78 = scmp.eq.s32.totalorder %s31, 0
      %p79 = por %p77, %p78
      %s81 = sadd.s32 %s80, 1
      %p84 = scmp.eq.s32.totalorder %s25, 1
      %p85 = scmp.ne.s32.totalorder %s80, %s82
      %p86 = scmp.eq.s32.totalorder %s25, 0
      %p87 = por %p85, %p86
      %p88 = scmp.ne.s32.totalorder %s80, %s82
      %p89 = scmp.eq.s32.totalorder %s30, 1
      %p90 = por %p88, %p89
      %p91 = scmp.ne.s32.totalorder %s82, %s83
      %p92 = scmp.eq.s32.totalorder %s30, 0
      %p93 = por %p91, %p92
      %p94 = scmp.ne.s32.totalorder %s82, %s83
      %p95 = scmp.eq.s32.totalorder %s31, 1
      %p96 = por %p94, %p95
      %p98 = scmp.ne.s32.totalorder %s83, %s97
      %p99 = scmp.eq.s32.totalorder %s31, 0
      %p100 = por %p98, %p99
      %s102 = sadd.s32 %s101, 1
      %p105 = scmp.eq.s32.totalorder %s25, 1
      %p106 = scmp.ne.s32.totalorder %s101, %s103
      %p107 = scmp.eq.s32.totalorder %s25, 0
      %p108 = por %p106, %p107
      %p109 = scmp.ne.s32.totalorder %s101, %s103
      %p110 = scmp.eq.s32.totalorder %s30, 1
      %p111 = por %p109, %p110
      %p112 = scmp.ne.s32.totalorder %s103, %s104
      %p113 = scmp.eq.s32.totalorder %s30, 0
      %p114 = por %p112, %p113
      %p115 = scmp.ne.s32.totalorder %s103, %s104
      %p116 = scmp.eq.s32.totalorder %s31, 1
      %p117 = por %p115, %p116
      %p119 = scmp.ne.s32.totalorder %s104, %s118
      %p120 = scmp.eq.s32.totalorder %s31, 0
      %p121 = por %p119, %p120
      %s123 = sadd.s32 %s122, 1
      %p126 = scmp.eq.s32.totalorder %s25, 1
      %p127 = scmp.ne.s32.totalorder %s122, %s124
      %p128 = scmp.eq.s32.totalorder %s25, 0
      %p129 = por %p127, %p128
      %p130 = scmp.ne.s32.totalorder %s122, %s124
      %p131 = scmp.eq.s32.totalorder %s30, 1
      %p132 = por %p130, %p131
      %p133 = scmp.ne.s32.totalorder %s124, %s125
      %p134 = scmp.eq.s32.totalorder %s30, 0
      %p135 = por %p133, %p134
      %p136 = scmp.ne.s32.totalorder %s124, %s125
      %p137 = scmp.eq.s32.totalorder %s31, 1
      %p138 = por %p136, %p137
      %p140 = scmp.ne.s32.totalorder %s125, %s139
      %p141 = scmp.eq.s32.totalorder %s31, 0
      %p142 = por %p140, %p141
      %s144 = sadd.s32 %s143, 1
      %p147 = scmp.eq.s32.totalorder %s25, 1
      %p148 = scmp.ne.s32.totalorder %s143, %s145
      %p149 = scmp.eq.s32.totalorder %s25, 0
      %p150 = por %p148, %p149
      %p151 = scmp.ne.s32.totalorder %s143, %s145
      %p152 = scmp.eq.s32.totalorder %s30, 1
      %p153 = por %p151, %p152
      %p154 = scmp.ne.s32.totalorder %s145, %s146
      %p155 = scmp.eq.s32.totalorder %s30, 0
      %p156 = por %p154, %p155
      %p157 = scmp.ne.s32.totalorder %s145, %s146
      %p158 = scmp.eq.s32.totalorder %s31, 1
      %p159 = por %p157, %p158
      %p161 = scmp.ne.s32.totalorder %s146, %s160
      %p162 = scmp.eq.s32.totalorder %s31, 0
      %p163 = por %p161, %p162
      %s165 = sadd.s32 %s164, 1
      %p168 = scmp.eq.s32.totalorder %s25, 1
      %p169 = scmp.ne.s32.totalorder %s164, %s166
      %p170 = scmp.eq.s32.totalorder %s25, 0
      %p171 = por %p169, %p170
      %p172 = scmp.ne.s32.totalorder %s164, %s166
      %p173 = scmp.eq.s32.totalorder %s30, 1
      %p174 = por %p172, %p173
      %p175 = scmp.ne.s32.totalorder %s166, %s167
      %p176 = scmp.eq.s32.totalorder %s30, 0
      %p177 = por %p175, %p176
      %p178 = scmp.ne.s32.totalorder %s166, %s167
      %p179 = scmp.eq.s32.totalorder %s31, 1
      %p180 = por %p178, %p179
      %p182 = scmp.ne.s32.totalorder %s167, %s181
      %p183 = scmp.eq.s32.totalorder %s31, 0
      %p184 = por %p182, %p183
      %s186 = sadd.s32 %s185, 1
      %p189 = scmp.eq.s32.totalorder %s25, 1
      %p190 = scmp.ne.s32.totalorder %s185, %s187
      %p191 = scmp.eq.s32.totalorder %s25, 0
      %p192 = por %p190, %p191
      %p193 = scmp.ne.s32.totalorder %s185, %s187
      %p194 = scmp.eq.s32.totalorder %s30, 1
      %p195 = por %p193, %p194
      %p196 = scmp.ne.s32.totalorder %s187, %s188
      %p197 = scmp.eq.s32.totalorder %s30, 0
      %p198 = por %p196, %p197
      %p199 = scmp.ne.s32.totalorder %s187, %s188
      %p200 = scmp.eq.s32.totalorder %s31, 1
      %p201 = por %p199, %p200
      %p203 = scmp.ne.s32.totalorder %s188, %s202
      %p204 = scmp.eq.s32.totalorder %s31, 0
      %p205 = por %p203, %p204
      %s207 = sadd.s32 %s206, 1
      %p210 = scmp.eq.s32.totalorder %s25, 1
      %p211 = scmp.ne.s32.totalorder %s206, %s208
      %p212 = scmp.eq.s32.totalorder %s25, 0
      %p213 = por %p211, %p212
      %p214 = scmp.ne.s32.totalorder %s206, %s208
      %p215 = scmp.eq.s32.totalorder %s30, 1
      %p216 = por %p214, %p215
      %p217 = scmp.ne.s32.totalorder %s208, %s209
      %p218 = scmp.eq.s32.totalorder %s30, 0
      %p219 = por %p217, %p218
      %p220 = scmp.ne.s32.totalorder %s208, %s209
      %p221 = scmp.eq.s32.totalorder %s31, 1
      %p222 = por %p220, %p221
      %p224 = scmp.ne.s32.totalorder %s209, %s223
      %p225 = scmp.eq.s32.totalorder %s31, 0
      %p226 = por %p224, %p225
      %s228 = sadd.s32 %s227, 1
      %p231 = scmp.eq.s32.totalorder %s25, 1
      %p232 = scmp.ne.s32.totalorder %s227, %s229
      %p233 = scmp.eq.s32.totalorder %s25, 0
      %p234 = por %p232, %p233
      %p235 = scmp.ne.s32.totalorder %s227, %s229
      %p236 = scmp.eq.s32.totalorder %s30, 1
      %p237 = por %p235, %p236
      %p238 = scmp.ne.s32.totalorder %s229, %s230
      %p239 = scmp.eq.s32.totalorder %s30, 0
      %p240 = por %p238, %p239
      %p241 = scmp.ne.s32.totalorder %s229, %s230
      %p242 = scmp.eq.s32.totalorder %s31, 1
      %p243 = por %p241, %p242
      %p245 = scmp.ne.s32.totalorder %s230, %s244
      %p246 = scmp.eq.s32.totalorder %s31, 0
      %p247 = por %p245, %p246
      %s249 = sadd.s32 %s248, 1
      %p252 = scmp.eq.s32.totalorder %s25, 1
      %p253 = scmp.ne.s32.totalorder %s248, %s250
      %p254 = scmp.eq.s32.totalorder %s25, 0
      %p255 = por %p253, %p254
      %p256 = scmp.ne.s32.totalorder %s248, %s250
      %p257 = scmp.eq.s32.totalorder %s30, 1
      %p258 = por %p256, %p257
      %p259 = scmp.ne.s32.totalorder %s250, %s251
      %p260 = scmp.eq.s32.totalorder %s30, 0
      %p261 = por %p259, %p260
      %p262 = scmp.ne.s32.totalorder %s250, %s251
      %p263 = scmp.eq.s32.totalorder %s31, 1
      %p264 = por %p262, %p263
      %p266 = scmp.ne.s32.totalorder %s251, %s265
      %p267 = scmp.eq.s32.totalorder %s31, 0
      %p268 = por %p266, %p267
      %s270 = sadd.s32 %s269, 1
      %p273 = scmp.eq.s32.totalorder %s25, 1
      %p274 = scmp.ne.s32.totalorder %s269, %s271
      %p275 = scmp.eq.s32.totalorder %s25, 0
      %p276 = por %p274, %p275
      %p277 = scmp.ne.s32.totalorder %s269, %s271
      %p278 = scmp.eq.s32.totalorder %s30, 1
      %p279 = por %p277, %p278
      %p280 = scmp.ne.s32.totalorder %s271, %s272
      %p281 = scmp.eq.s32.totalorder %s30, 0
      %p282 = por %p280, %p281
      %p283 = scmp.ne.s32.totalorder %s271, %s272
      %p284 = scmp.eq.s32.totalorder %s31, 1
      %p285 = por %p283, %p284
      %p287 = scmp.ne.s32.totalorder %s272, %s286
      %p288 = scmp.eq.s32.totalorder %s31, 0
      %p289 = por %p287, %p288
      %s291 = sadd.s32 %s290, 1
      %p294 = scmp.eq.s32.totalorder %s25, 1
      %p295 = scmp.ne.s32.totalorder %s290, %s292
      %p296 = scmp.eq.s32.totalorder %s25, 0
      %p297 = por %p295, %p296
      %p298 = scmp.ne.s32.totalorder %s290, %s292
      %p299 = scmp.eq.s32.totalorder %s30, 1
      %p300 = por %p298, %p299
      %p301 = scmp.ne.s32.totalorder %s292, %s293
      %p302 = scmp.eq.s32.totalorder %s30, 0
      %p303 = por %p301, %p302
      %p304 = scmp.ne.s32.totalorder %s292, %s293
      %p305 = scmp.eq.s32.totalorder %s31, 1
      %p306 = por %p304, %p305
      %p308 = scmp.ne.s32.totalorder %s293, %s307
      %p309 = scmp.eq.s32.totalorder %s31, 0
      %p310 = por %p308, %p309
      %s312 = sadd.s32 %s311, 1
      %p315 = scmp.eq.s32.totalorder %s25, 1
      %p316 = scmp.ne.s32.totalorder %s311, %s313
      %p317 = scmp.eq.s32.totalorder %s25, 0
      %p318 = por %p316, %p317
      %p319 = scmp.ne.s32.totalorder %s311, %s313
      %p320 = scmp.eq.s32.totalorder %s30, 1
      %p321 = por %p319, %p320
      %p322 = scmp.ne.s32.totalorder %s313, %s314
      %p323 = scmp.eq.s32.totalorder %s30, 0
      %p324 = por %p322, %p323
      %p325 = scmp.ne.s32.totalorder %s313, %s314
      %p326 = scmp.eq.s32.totalorder %s31, 1
      %p327 = por %p325, %p326
      %p329 = scmp.ne.s32.totalorder %s314, %s328
      %p330 = scmp.eq.s32.totalorder %s31, 0
      %p331 = por %p329, %p330
      %s332 = ssub.s32 %s25, %s32
      %p333 = scmp.eq.s32.totalorder %s332, 0
      %s335 = sadd.s32 %s334, 1
      %s336 = scalar_select %p333, %s334, %s335
      %p339 = pneg %p333
      %p340 = scmp.eq.s32.totalorder %s25, 1
      %p341 = por %p339, %p340
      %p342 = scmp.ne.s32.totalorder %s334, %s337
      %p343 = scmp.eq.s32.totalorder %s25, 0
      %p344 = por %p342, %p343
      %p345 = scmp.ne.s32.totalorder %s334, %s337
      %p346 = scmp.eq.s32.totalorder %s30, 1
      %p347 = por %p345, %p346
      %p348 = scmp.ne.s32.totalorder %s337, %s338
      %p349 = scmp.eq.s32.totalorder %s30, 0
      %p350 = por %p348, %p349
      %p351 = scmp.ne.s32.totalorder %s337, %s338
      %p352 = scmp.eq.s32.totalorder %s31, 1
      %p353 = por %p351, %p352
      %p355 = scmp.ne.s32.totalorder %s338, %s354
      %p356 = scmp.eq.s32.totalorder %s31, 0
      %p357 = por %p355, %p356
      %p358 = scmp.le.s32.totalorder 1, %s25
      %p359 = scmp.lt.s32.totalorder %s25, 3
      %p360 = pnand %p358, %p359
      %p361 = pneg %p360
      // Predicated region
      $region9: #{tpu_custom_call.1} parent=5 // pred_check
        _
      $region10: #{tpu_custom_call.1} parent=5 // pred_check_branch
        %363 = sbr.rel (%p360) target = $region12
      $region11: #{tpu_custom_call.1} parent=5 // pred_region
        %s364 = ssub.s32 %s25, 1
        // Predicated region
        $region13: #{tpu_custom_call.1} parent=11 // pred_check
          %p365 = pneg %p72
        $region14: #{tpu_custom_call.1} parent=11 // pred_check_branch
          %367 = sbr.rel (%p365) target = $region16
        $region15: #{tpu_custom_call.1} parent=11 // pred_region
          %369 = vsyncadd [#allocation3], 0
          %s370 = sshll.u32 %s1, 4
          %s371 = int_to_ptr.hbm [resolvable:$true] %s370
          %s372 = sshll.u32 [#allocation2], 4
          %s373 = int_to_ptr.vmem [resolvable:$true] %s372
          %378 = dma.hbm_to_vmem [thread:$0]  %s371, 12288, %s373, [#allocation3], 256, 256, 16
        $region16: #{tpu_custom_call.1} parent=11 // pred_fallthru
          _
        // Predicated region
        $region17: #{tpu_custom_call.1} parent=11 // pred_check
          %p379 = pneg %p93
        $region18: #{tpu_custom_call.1} parent=11 // pred_check_branch
          %381 = sbr.rel (%p379) target = $region20
        $region19: #{tpu_custom_call.1} parent=11 // pred_region
          _
        $region20: #{tpu_custom_call.1} parent=11 // pred_fallthru
          _
        // Predicated region
        $region21: #{tpu_custom_call.1} parent=11 // pred_check
          %p382 = pneg %p114
        $region22: #{tpu_custom_call.1} parent=11 // pred_check_branch
          %384 = sbr.rel (%p382) target = $region24
        $region23: #{tpu_custom_call.1} parent=11 // pred_region
          %386 = vsyncadd [#allocation6], 0
          %s387 = sshll.u32 %s3, 4
          %s388 = int_to_ptr.hbm [resolvable:$true] %s387
          %s389 = sshll.u32 [#allocation5], 4
          %s390 = int_to_ptr.vmem [resolvable:$true] %s389
          %395 = dma.hbm_to_vmem [thread:$0]  %s388, 8192, %s390, [#allocation6], 128, 128, 8
        $region24: #{tpu_custom_call.1} parent=11 // pred_fallthru
          _
        // Predicated region
        $region25: #{tpu_custom_call.1} parent=11 // pred_check
          %p396 = pneg %p135
        $region26: #{tpu_custom_call.1} parent=11 // pred_check_branch
          %398 = sbr.rel (%p396) target = $region28
        $region27: #{tpu_custom_call.1} parent=11 // pred_region
          _
        $region28: #{tpu_custom_call.1} parent=11 // pred_fallthru
          _
        // Predicated region
        $region29: #{tpu_custom_call.1} parent=11 // pred_check
          %p399 = pneg %p156
        $region30: #{tpu_custom_call.1} parent=11 // pred_check_branch
          %401 = sbr.rel (%p399) target = $region32
        $region31: #{tpu_custom_call.1} parent=11 // pred_region
          _
        $region32: #{tpu_custom_call.1} parent=11 // pred_fallthru
          _
        // Predicated region
        $region33: #{tpu_custom_call.1} parent=11 // pred_check
          %p402 = pneg %p177
        $region34: #{tpu_custom_call.1} parent=11 // pred_check_branch
          %404 = sbr.rel (%p402) target = $region36
        $region35: #{tpu_custom_call.1} parent=11 // pred_region
          _
        $region36: #{tpu_custom_call.1} parent=11 // pred_fallthru
          _
        // Predicated region
        $region37: #{tpu_custom_call.1} parent=11 // pred_check
          %p405 = pneg %p198
        $region38: #{tpu_custom_call.1} parent=11 // pred_check_branch
          %407 = sbr.rel (%p405) target = $region40
        $region39: #{tpu_custom_call.1} parent=11 // pred_region
          _
        $region40: #{tpu_custom_call.1} parent=11 // pred_fallthru
          _
        // Predicated region
        $region41: #{tpu_custom_call.1} parent=11 // pred_check
          %p408 = pneg %p219
        $region42: #{tpu_custom_call.1} parent=11 // pred_check_branch
          %410 = sbr.rel (%p408) target = $region44
        $region43: #{tpu_custom_call.1} parent=11 // pred_region
          _
        $region44: #{tpu_custom_call.1} parent=11 // pred_fallthru
          _
        // Predicated region
        $region45: #{tpu_custom_call.1} parent=11 // pred_check
          %p411 = pneg %p240
        $region46: #{tpu_custom_call.1} parent=11 // pred_check_branch
          %413 = sbr.rel (%p411) target = $region48
        $region47: #{tpu_custom_call.1} parent=11 // pred_region
          _
        $region48: #{tpu_custom_call.1} parent=11 // pred_fallthru
          _
        // Predicated region
        $region49: #{tpu_custom_call.1} parent=11 // pred_check
          %p414 = pneg %p261
        $region50: #{tpu_custom_call.1} parent=11 // pred_check_branch
          %416 = sbr.rel (%p414) target = $region52
        $region51: #{tpu_custom_call.1} parent=11 // pred_region
          _
        $region52: #{tpu_custom_call.1} parent=11 // pred_fallthru
          _
        // Predicated region
        $region53: #{tpu_custom_call.1} parent=11 // pred_check
          %p417 = pneg %p282
        $region54: #{tpu_custom_call.1} parent=11 // pred_check_branch
          %419 = sbr.rel (%p417) target = $region56
        $region55: #{tpu_custom_call.1} parent=11 // pred_region
          _
        $region56: #{tpu_custom_call.1} parent=11 // pred_fallthru
          _
        // Predicated region
        $region57: #{tpu_custom_call.1} parent=11 // pred_check
          %p420 = pneg %p303
        $region58: #{tpu_custom_call.1} parent=11 // pred_check_branch
          %422 = sbr.rel (%p420) target = $region60
        $region59: #{tpu_custom_call.1} parent=11 // pred_region
          _
        $region60: #{tpu_custom_call.1} parent=11 // pred_fallthru
          _
        // Predicated region
        $region61: #{tpu_custom_call.1} parent=11 // pred_check
          %p423 = pneg %p324
        $region62: #{tpu_custom_call.1} parent=11 // pred_check_branch
          %425 = sbr.rel (%p423) target = $region64
        $region63: #{tpu_custom_call.1} parent=11 // pred_region
          _
        $region64: #{tpu_custom_call.1} parent=11 // pred_fallthru
          _
      $region12: #{tpu_custom_call.1} parent=5 // pred_fallthru
        _
      %p426 = scmp.lt.s32.totalorder %s25, 2
      // Predicated region
      $region65: #{tpu_custom_call.1} parent=5 // pred_check
        %p427 = pneg %p426
      $region66: #{tpu_custom_call.1} parent=5 // pred_check_branch
        %429 = sbr.rel (%p427) target = $region68
      $region67: #{tpu_custom_call.1} parent=5 // pred_region
        // Predicated region
        $region69: #{tpu_custom_call.1} parent=67 // pred_check
          %p430 = pneg %p45
        $region70: #{tpu_custom_call.1} parent=67 // pred_check_branch
          %432 = sbr.rel (%p430) target = $region72
        $region71: #{tpu_custom_call.1} parent=67 // pred_region
          %s433 = smul.u32 2, %s25
          %p434 = scmp.lt.s32.totalorder %s433, 3
          %s435 = scalar_select %p434, %s433, 3
          %s436 = smul.addr %s435, 3
          %s437 = smul.addr %s436, 8
          %s438 = scalar_lea.vmem %s0, %s437
          %s439 = smul.u32 2, %s25
        $region72: #{tpu_custom_call.1} parent=67 // pred_fallthru
          _
      $region68: #{tpu_custom_call.1} parent=5 // pred_fallthru
        _
      %p440 = scmp.le.s32.totalorder 1, %s25
      %p441 = scmp.lt.s32.totalorder %s25, 3
      %p442 = pnand %p440, %p441
      %p443 = pneg %p442
      // Predicated region
      $region73: #{tpu_custom_call.1} parent=5 // pred_check
        _
      $region74: #{tpu_custom_call.1} parent=5 // pred_check_branch
        %445 = sbr.rel (%p442) target = $region76
      $region75: #{tpu_custom_call.1} parent=5 // pred_region
        %s446 = ssub.s32 %s25, 1
        // Predicated region
        $region77: #{tpu_custom_call.1} parent=75 // pred_check
          %p447 = pneg %p72
        $region78: #{tpu_custom_call.1} parent=75 // pred_check_branch
          %449 = sbr.rel (%p447) target = $region80
        $region79: #{tpu_custom_call.1} parent=75 // pred_region
          %451 = dma.done [#allocation3], 12288
        $region80: #{tpu_custom_call.1} parent=75 // pred_fallthru
          _
        // Predicated region
        $region81: #{tpu_custom_call.1} parent=75 // pred_check
          %p452 = pneg %p114
        $region82: #{tpu_custom_call.1} parent=75 // pred_check_branch
          %454 = sbr.rel (%p452) target = $region84
        $region83: #{tpu_custom_call.1} parent=75 // pred_region
          %456 = dma.done [#allocation6], 8192
        $region84: #{tpu_custom_call.1} parent=75 // pred_fallthru
          _
        %s457 = smul.u32 2, %s30
        %p458 = scmp.lt.s32.totalorder %s457, 3
        %s459 = scalar_select %p458, %s457, 3
        %s460 = smul.addr %s459, 3
        %s461 = smul.addr %s460, 8
        %s462 = scalar_lea.vmem %s0, %s461
        %p463 = pneg %p51
        %p464 = pneg %p48
        %p465 = pneg %p72
        %p466 = pneg %p69
        %p467 = pneg %p93
        %p468 = pneg %p90
        %p469 = pneg %p114
        %p470 = pneg %p111
        %p471 = pneg %p135
        %p472 = pneg %p132
        %p473 = pneg %p156
        %p474 = pneg %p153
        %p475 = pneg %p177
        %p476 = pneg %p174
        %p477 = pneg %p198
        %p478 = pneg %p195
        %p479 = pneg %p219
        %p480 = pneg %p216
        %p481 = pneg %p240
        %p482 = pneg %p237
        %p483 = pneg %p261
        %p484 = pneg %p258
        %p485 = pneg %p282
        %p486 = pneg %p279
        %p487 = pneg %p303
        %p488 = pneg %p300
        %p489 = pneg %p324
        %p490 = pneg %p321
        %p491 = pneg %p350
        %p492 = pneg %p347
        %s493 = sand.u32 %s337, 1
        %s494 = scalar_lea.sflag [#allocation4], %s493
        %s495 = sand.u32 %s337, 1
        %s496 = smul.addr %s495, 16
        %s497 = scalar_lea.vmem [#allocation7], %s496
        %s498 = smul.u32 2, %s30
        %p499 = scmp.lt.s32.totalorder %s498, 3
        %s500 = scalar_select %p499, %s498, 3
        %s501 = smul.addr %s500, 3
        %s502 = smul.addr %s501, 8
        %s503 = scalar_lea.vmem %s0, %s502
        %s504 = smul.u32 2, %s30
        %s505 = smul.u32 2, %s30
        %v507 = vld [vmem:[%s503] sm:$0xff]
        %v508 = vld [vmem:[%s503 + $0x8] sm:$0xff]
        %v509 = vld [vmem:[%s503 + $0x10] sm:$0xff]
        %v510 = vld [vmem:[%s503 + $0x18] sm:$0xff]
        %v511 = vld [vmem:[%s503 + $0x20] sm:$0xff]
        %v512 = vld [vmem:[%s503 + $0x28] sm:$0xff]
        %v513 = vpack.c.bf16 %v510, %v507
        %v514 = vpack.c.bf16 %v511, %v508
        %v515 = vpack.c.bf16 %v512, %v509
        %v516 = vld [vmem:[#allocation2] sm:$0xff]
        %v517 = vld [vmem:[#allocation2 + $0x8] sm:$0xff]
        %v518 = vld [vmem:[#allocation2 + $0x10] sm:$0xff]
        %v519 = vld [vmem:[#allocation2 + $0x18] sm:$0xff]
        %v520 = vld [vmem:[#allocation2 + $0x20] sm:$0xff]
        %v521 = vld [vmem:[#allocation2 + $0x28] sm:$0xff]
        %v522 = vld [vmem:[#allocation2 + $0x30] sm:$0xff]
        %v523 = vld [vmem:[#allocation2 + $0x38] sm:$0xff]
        %v524 = vld [vmem:[#allocation2 + $0x40] sm:$0xff]
        %v525 = vld [vmem:[#allocation2 + $0x48] sm:$0xff]
        %v526 = vld [vmem:[#allocation2 + $0x50] sm:$0xff]
        %v527 = vld [vmem:[#allocation2 + $0x58] sm:$0xff]
        %v528 = vld [vmem:[#allocation2 + $0x60] sm:$0xff]
        %v529 = vld [vmem:[#allocation2 + $0x68] sm:$0xff]
        %v530 = vld [vmem:[#allocation2 + $0x70] sm:$0xff]
        %v531 = vld [vmem:[#allocation2 + $0x78] sm:$0xff]
        %v532 = vld [vmem:[#allocation2 + $0x80] sm:$0xff]
        %v533 = vld [vmem:[#allocation2 + $0x88] sm:$0xff]
        %v534 = vld [vmem:[#allocation2 + $0x90] sm:$0xff]
        %v535 = vld [vmem:[#allocation2 + $0x98] sm:$0xff]
        %v536 = vld [vmem:[#allocation2 + $0xa0] sm:$0xff]
        %v537 = vld [vmem:[#allocation2 + $0xa8] sm:$0xff]
        %v538 = vld [vmem:[#allocation2 + $0xb0] sm:$0xff]
        %v539 = vld [vmem:[#allocation2 + $0xb8] sm:$0xff]
        %v540 = vld [vmem:[#allocation2 + $0xc0] sm:$0xff]
        %v541 = vld [vmem:[#allocation2 + $0xc8] sm:$0xff]
        %v542 = vld [vmem:[#allocation2 + $0xd0] sm:$0xff]
        %v543 = vld [vmem:[#allocation2 + $0xd8] sm:$0xff]
        %v544 = vld [vmem:[#allocation2 + $0xe0] sm:$0xff]
        %v545 = vld [vmem:[#allocation2 + $0xe8] sm:$0xff]
        %v546 = vld [vmem:[#allocation2 + $0xf0] sm:$0xff]
        %v547 = vld [vmem:[#allocation2 + $0xf8] sm:$0xff]
        %v548 = vld [vmem:[#allocation2 + $0x100] sm:$0xff]
        %v549 = vld [vmem:[#allocation2 + $0x108] sm:$0xff]
        %v550 = vld [vmem:[#allocation2 + $0x110] sm:$0xff]
        %v551 = vld [vmem:[#allocation2 + $0x118] sm:$0xff]
        %v552 = vld [vmem:[#allocation2 + $0x120] sm:$0xff]
        %v553 = vld [vmem:[#allocation2 + $0x128] sm:$0xff]
        %v554 = vld [vmem:[#allocation2 + $0x130] sm:$0xff]
        %v555 = vld [vmem:[#allocation2 + $0x138] sm:$0xff]
        %v556 = vld [vmem:[#allocation2 + $0x140] sm:$0xff]
        %v557 = vld [vmem:[#allocation2 + $0x148] sm:$0xff]
        %v558 = vld [vmem:[#allocation2 + $0x150] sm:$0xff]
        %v559 = vld [vmem:[#allocation2 + $0x158] sm:$0xff]
        %v560 = vld [vmem:[#allocation2 + $0x160] sm:$0xff]
        %v561 = vld [vmem:[#allocation2 + $0x168] sm:$0xff]
        %v562 = vld [vmem:[#allocation2 + $0x170] sm:$0xff]
        %v563 = vld [vmem:[#allocation2 + $0x178] sm:$0xff]
        %v564 = vld [vmem:[#allocation2 + $0x180] sm:$0xff]
        %v565 = vld [vmem:[#allocation2 + $0x188] sm:$0xff]
        %v566 = vld [vmem:[#allocation2 + $0x190] sm:$0xff]
        %v567 = vld [vmem:[#allocation2 + $0x198] sm:$0xff]
        %v568 = vld [vmem:[#allocation2 + $0x1a0] sm:$0xff]
        %v569 = vld [vmem:[#allocation2 + $0x1a8] sm:$0xff]
        %v570 = vld [vmem:[#allocation2 + $0x1b0] sm:$0xff]
        %v571 = vld [vmem:[#allocation2 + $0x1b8] sm:$0xff]
        %v572 = vld [vmem:[#allocation2 + $0x1c0] sm:$0xff]
        %v573 = vld [vmem:[#allocation2 + $0x1c8] sm:$0xff]
        %v574 = vld [vmem:[#allocation2 + $0x1d0] sm:$0xff]
        %v575 = vld [vmem:[#allocation2 + $0x1d8] sm:$0xff]
        %v576 = vld [vmem:[#allocation2 + $0x1e0] sm:$0xff]
        %v577 = vld [vmem:[#allocation2 + $0x1e8] sm:$0xff]
        %v578 = vld [vmem:[#allocation2 + $0x1f0] sm:$0xff]
        %v579 = vld [vmem:[#allocation2 + $0x1f8] sm:$0xff]
        %v580 = vld [vmem:[#allocation2 + $0x200] sm:$0xff]
        %v581 = vld [vmem:[#allocation2 + $0x208] sm:$0xff]
        %v582 = vld [vmem:[#allocation2 + $0x210] sm:$0xff]
        %v583 = vld [vmem:[#allocation2 + $0x218] sm:$0xff]
        %v584 = vld [vmem:[#allocation2 + $0x220] sm:$0xff]
        %v585 = vld [vmem:[#allocation2 + $0x228] sm:$0xff]
        %v586 = vld [vmem:[#allocation2 + $0x230] sm:$0xff]
        %v587 = vld [vmem:[#allocation2 + $0x238] sm:$0xff]
        %v588 = vld [vmem:[#allocation2 + $0x240] sm:$0xff]
        %v589 = vld [vmem:[#allocation2 + $0x248] sm:$0xff]
        %v590 = vld [vmem:[#allocation2 + $0x250] sm:$0xff]
        %v591 = vld [vmem:[#allocation2 + $0x258] sm:$0xff]
        %v592 = vld [vmem:[#allocation2 + $0x260] sm:$0xff]
        %v593 = vld [vmem:[#allocation2 + $0x268] sm:$0xff]
        %v594 = vld [vmem:[#allocation2 + $0x270] sm:$0xff]
        %v595 = vld [vmem:[#allocation2 + $0x278] sm:$0xff]
        %v596 = vld [vmem:[#allocation2 + $0x280] sm:$0xff]
        %v597 = vld [vmem:[#allocation2 + $0x288] sm:$0xff]
        %v598 = vld [vmem:[#allocation2 + $0x290] sm:$0xff]
        %v599 = vld [vmem:[#allocation2 + $0x298] sm:$0xff]
        %v600 = vld [vmem:[#allocation2 + $0x2a0] sm:$0xff]
        %v601 = vld [vmem:[#allocation2 + $0x2a8] sm:$0xff]
        %v602 = vld [vmem:[#allocation2 + $0x2b0] sm:$0xff]
        %v603 = vld [vmem:[#allocation2 + $0x2b8] sm:$0xff]
        %v604 = vld [vmem:[#allocation2 + $0x2c0] sm:$0xff]
        %v605 = vld [vmem:[#allocation2 + $0x2c8] sm:$0xff]
        %v606 = vld [vmem:[#allocation2 + $0x2d0] sm:$0xff]
        %v607 = vld [vmem:[#allocation2 + $0x2d8] sm:$0xff]
        %v608 = vld [vmem:[#allocation2 + $0x2e0] sm:$0xff]
        %v609 = vld [vmem:[#allocation2 + $0x2e8] sm:$0xff]
        %v610 = vld [vmem:[#allocation2 + $0x2f0] sm:$0xff]
        %v611 = vld [vmem:[#allocation2 + $0x2f8] sm:$0xff]
        %v612 = vld [vmem:[%s2] sm:$0xf]
        %v614 = vperm.slane %v612, 0
        %v615 = vperm.slane %v612, 1
        %v616 = vperm.slane %v612, 2
        %v617 = vperm.slane %v612, 3
        %v718 = vunpack.c.l.b16 %v516
        %v719 = vunpack.c.h.b16 %v516
        %v720 = vunpack.c.l.b16 %v517
        %v721 = vunpack.c.h.b16 %v517
        %v722 = vunpack.c.l.b16 %v518
        %v723 = vunpack.c.h.b16 %v518
        %v724 = vunpack.c.l.b16 %v519
        %v725 = vunpack.c.h.b16 %v519
        %v726 = vunpack.c.l.b16 %v520
        %v727 = vunpack.c.h.b16 %v520
        %v728 = vunpack.c.l.b16 %v521
        %v729 = vunpack.c.h.b16 %v521
        %v730 = vunpack.c.l.b16 %v522
        %v731 = vunpack.c.h.b16 %v522
        %v732 = vunpack.c.l.b16 %v523
        %v733 = vunpack.c.h.b16 %v523
        %v734 = vunpack.c.l.b16 %v524
        %v735 = vunpack.c.h.b16 %v524
        %v736 = vunpack.c.l.b16 %v525
        %v737 = vunpack.c.h.b16 %v525
        %v738 = vunpack.c.l.b16 %v526
        %v739 = vunpack.c.h.b16 %v526
        %v740 = vunpack.c.l.b16 %v527
        %v741 = vunpack.c.h.b16 %v527
        %v742 = vunpack.c.l.b16 %v528
        %v743 = vunpack.c.h.b16 %v528
        %v744 = vunpack.c.l.b16 %v529
        %v745 = vunpack.c.h.b16 %v529
        %v746 = vunpack.c.l.b16 %v530
        %v747 = vunpack.c.h.b16 %v530
        %v748 = vunpack.c.l.b16 %v531
        %v749 = vunpack.c.h.b16 %v531
        %v750 = vunpack.c.l.b16 %v532
        %v751 = vunpack.c.h.b16 %v532
        %v752 = vunpack.c.l.b16 %v533
        %v753 = vunpack.c.h.b16 %v533
        %v754 = vunpack.c.l.b16 %v534
        %v755 = vunpack.c.h.b16 %v534
        %v756 = vunpack.c.l.b16 %v535
        %v757 = vunpack.c.h.b16 %v535
        %v758 = vunpack.c.l.b16 %v536
        %v759 = vunpack.c.h.b16 %v536
        %v760 = vunpack.c.l.b16 %v537
        %v761 = vunpack.c.h.b16 %v537
        %v762 = vunpack.c.l.b16 %v538
        %v763 = vunpack.c.h.b16 %v538
        %v764 = vunpack.c.l.b16 %v539
        %v765 = vunpack.c.h.b16 %v539
        %v766 = vunpack.c.l.b16 %v540
        %v767 = vunpack.c.h.b16 %v540
        %v768 = vunpack.c.l.b16 %v541
        %v769 = vunpack.c.h.b16 %v541
        %v770 = vunpack.c.l.b16 %v542
        %v771 = vunpack.c.h.b16 %v542
        %v772 = vunpack.c.l.b16 %v543
        %v773 = vunpack.c.h.b16 %v543
        %v774 = vunpack.c.l.b16 %v544
        %v775 = vunpack.c.h.b16 %v544
        %v776 = vunpack.c.l.b16 %v545
        %v777 = vunpack.c.h.b16 %v545
        %v778 = vunpack.c.l.b16 %v546
        %v779 = vunpack.c.h.b16 %v546
        %v780 = vunpack.c.l.b16 %v547
        %v781 = vunpack.c.h.b16 %v547
        %v782 = vunpack.c.l.b16 %v548
        %v783 = vunpack.c.h.b16 %v548
        %v784 = vunpack.c.l.b16 %v549
        %v785 = vunpack.c.h.b16 %v549
        %v786 = vunpack.c.l.b16 %v550
        %v787 = vunpack.c.h.b16 %v550
        %v788 = vunpack.c.l.b16 %v551
        %v789 = vunpack.c.h.b16 %v551
        %v790 = vunpack.c.l.b16 %v552
        %v791 = vunpack.c.h.b16 %v552
        %v792 = vunpack.c.l.b16 %v553
        %v793 = vunpack.c.h.b16 %v553
        %v794 = vunpack.c.l.b16 %v554
        %v795 = vunpack.c.h.b16 %v554
        %v796 = vunpack.c.l.b16 %v555
        %v797 = vunpack.c.h.b16 %v555
        %v798 = vunpack.c.l.b16 %v556
        %v799 = vunpack.c.h.b16 %v556
        %v800 = vunpack.c.l.b16 %v557
        %v801 = vunpack.c.h.b16 %v557
        %v802 = vunpack.c.l.b16 %v558
        %v803 = vunpack.c.h.b16 %v558
        %v804 = vunpack.c.l.b16 %v559
        %v805 = vunpack.c.h.b16 %v559
        %v806 = vunpack.c.l.b16 %v560
        %v807 = vunpack.c.h.b16 %v560
        %v808 = vunpack.c.l.b16 %v561
        %v809 = vunpack.c.h.b16 %v561
        %v810 = vunpack.c.l.b16 %v562
        %v811 = vunpack.c.h.b16 %v562
        %v812 = vunpack.c.l.b16 %v563
        %v813 = vunpack.c.h.b16 %v563
        %v814 = vunpack.c.l.b16 %v564
        %v815 = vunpack.c.h.b16 %v564
        %v816 = vunpack.c.l.b16 %v565
        %v817 = vunpack.c.h.b16 %v565
        %v818 = vunpack.c.l.b16 %v566
        %v819 = vunpack.c.h.b16 %v566
        %v820 = vunpack.c.l.b16 %v567
        %v821 = vunpack.c.h.b16 %v567
        %v822 = vunpack.c.l.b16 %v568
        %v823 = vunpack.c.h.b16 %v568
        %v824 = vunpack.c.l.b16 %v569
        %v825 = vunpack.c.h.b16 %v569
        %v826 = vunpack.c.l.b16 %v570
        %v827 = vunpack.c.h.b16 %v570
        %v828 = vunpack.c.l.b16 %v571
        %v829 = vunpack.c.h.b16 %v571
        %v830 = vunpack.c.l.b16 %v572
        %v831 = vunpack.c.h.b16 %v572
        %v832 = vunpack.c.l.b16 %v573
        %v833 = vunpack.c.h.b16 %v573
        %v834 = vunpack.c.l.b16 %v574
        %v835 = vunpack.c.h.b16 %v574
        %v836 = vunpack.c.l.b16 %v575
        %v837 = vunpack.c.h.b16 %v575
        %v838 = vunpack.c.l.b16 %v576
        %v839 = vunpack.c.h.b16 %v576
        %v840 = vunpack.c.l.b16 %v577
        %v841 = vunpack.c.h.b16 %v577
        %v842 = vunpack.c.l.b16 %v578
        %v843 = vunpack.c.h.b16 %v578
        %v844 = vunpack.c.l.b16 %v579
        %v845 = vunpack.c.h.b16 %v579
        %v846 = vunpack.c.l.b16 %v580
        %v847 = vunpack.c.h.b16 %v580
        %v848 = vunpack.c.l.b16 %v581
        %v849 = vunpack.c.h.b16 %v581
        %v850 = vunpack.c.l.b16 %v582
        %v851 = vunpack.c.h.b16 %v582
        %v852 = vunpack.c.l.b16 %v583
        %v853 = vunpack.c.h.b16 %v583
        %v854 = vunpack.c.l.b16 %v584
        %v855 = vunpack.c.h.b16 %v584
        %v856 = vunpack.c.l.b16 %v585
        %v857 = vunpack.c.h.b16 %v585
        %v858 = vunpack.c.l.b16 %v586
        %v859 = vunpack.c.h.b16 %v586
        %v860 = vunpack.c.l.b16 %v587
        %v861 = vunpack.c.h.b16 %v587
        %v862 = vunpack.c.l.b16 %v588
        %v863 = vunpack.c.h.b16 %v588
        %v864 = vunpack.c.l.b16 %v589
        %v865 = vunpack.c.h.b16 %v589
        %v866 = vunpack.c.l.b16 %v590
        %v867 = vunpack.c.h.b16 %v590
        %v868 = vunpack.c.l.b16 %v591
        %v869 = vunpack.c.h.b16 %v591
        %v870 = vunpack.c.l.b16 %v592
        %v871 = vunpack.c.h.b16 %v592
        %v872 = vunpack.c.l.b16 %v593
        %v873 = vunpack.c.h.b16 %v593
        %v874 = vunpack.c.l.b16 %v594
        %v875 = vunpack.c.h.b16 %v594
        %v876 = vunpack.c.l.b16 %v595
        %v877 = vunpack.c.h.b16 %v595
        %v878 = vunpack.c.l.b16 %v596
        %v879 = vunpack.c.h.b16 %v596
        %v880 = vunpack.c.l.b16 %v597
        %v881 = vunpack.c.h.b16 %v597
        %v882 = vunpack.c.l.b16 %v598
        %v883 = vunpack.c.h.b16 %v598
        %v884 = vunpack.c.l.b16 %v599
        %v885 = vunpack.c.h.b16 %v599
        %v886 = vunpack.c.l.b16 %v600
        %v887 = vunpack.c.h.b16 %v600
        %v888 = vunpack.c.l.b16 %v601
        %v889 = vunpack.c.h.b16 %v601
        %v890 = vunpack.c.l.b16 %v602
        %v891 = vunpack.c.h.b16 %v602
        %v892 = vunpack.c.l.b16 %v603
        %v893 = vunpack.c.h.b16 %v603
        %v894 = vunpack.c.l.b16 %v604
        %v895 = vunpack.c.h.b16 %v604
        %v896 = vunpack.c.l.b16 %v605
        %v897 = vunpack.c.h.b16 %v605
        %v898 = vunpack.c.l.b16 %v606
        %v899 = vunpack.c.h.b16 %v606
        %v900 = vunpack.c.l.b16 %v607
        %v901 = vunpack.c.h.b16 %v607
        %v902 = vunpack.c.l.b16 %v608
        %v903 = vunpack.c.h.b16 %v608
        %v904 = vunpack.c.l.b16 %v609
        %v905 = vunpack.c.h.b16 %v609
        %v906 = vunpack.c.l.b16 %v610
        %v907 = vunpack.c.h.b16 %v610
        %v908 = vunpack.c.l.b16 %v611
        %v909 = vunpack.c.h.b16 %v611
        %v910 = vpack.c.b16 %v722, %v718
        %v911 = vpack.c.b16 %v723, %v719
        %v912 = vpack.c.b16 %v724, %v720
        %v913 = vpack.c.b16 %v725, %v721
        %v914 = vpack.c.b16 %v730, %v726
        %v915 = vpack.c.b16 %v731, %v727
        %v916 = vpack.c.b16 %v732, %v728
        %v917 = vpack.c.b16 %v733, %v729
        %v918 = vpack.c.b16 %v738, %v734
        %v919 = vpack.c.b16 %v739, %v735
        %v920 = vpack.c.b16 %v740, %v736
        %v921 = vpack.c.b16 %v741, %v737
        %v922 = vpack.c.b16 %v746, %v742
        %v923 = vpack.c.b16 %v747, %v743
        %v924 = vpack.c.b16 %v748, %v744
        %v925 = vpack.c.b16 %v749, %v745
        %v926 = vpack.c.b16 %v754, %v750
        %v927 = vpack.c.b16 %v755, %v751
        %v928 = vpack.c.b16 %v756, %v752
        %v929 = vpack.c.b16 %v757, %v753
        %v930 = vpack.c.b16 %v762, %v758
        %v931 = vpack.c.b16 %v763, %v759
        %v932 = vpack.c.b16 %v764, %v760
        %v933 = vpack.c.b16 %v765, %v761
        %v934 = vpack.c.b16 %v770, %v766
        %v935 = vpack.c.b16 %v771, %v767
        %v936 = vpack.c.b16 %v772, %v768
        %v937 = vpack.c.b16 %v773, %v769
        %v938 = vpack.c.b16 %v778, %v774
        %v939 = vpack.c.b16 %v779, %v775
        %v940 = vpack.c.b16 %v780, %v776
        %v941 = vpack.c.b16 %v781, %v777
        %v942 = vpack.c.b16 %v786, %v782
        %v943 = vpack.c.b16 %v787, %v783
        %v944 = vpack.c.b16 %v788, %v784
        %v945 = vpack.c.b16 %v789, %v785
        %v946 = vpack.c.b16 %v794, %v790
        %v947 = vpack.c.b16 %v795, %v791
        %v948 = vpack.c.b16 %v796, %v792
        %v949 = vpack.c.b16 %v797, %v793
        %v950 = vpack.c.b16 %v802, %v798
        %v951 = vpack.c.b16 %v803, %v799
        %v952 = vpack.c.b16 %v804, %v800
        %v953 = vpack.c.b16 %v805, %v801
        %v954 = vpack.c.b16 %v810, %v806
        %v955 = vpack.c.b16 %v811, %v807
        %v956 = vpack.c.b16 %v812, %v808
        %v957 = vpack.c.b16 %v813, %v809
        %v958 = vpack.c.b16 %v818, %v814
        %v959 = vpack.c.b16 %v819, %v815
        %v960 = vpack.c.b16 %v820, %v816
        %v961 = vpack.c.b16 %v821, %v817
        %v962 = vpack.c.b16 %v826, %v822
        %v963 = vpack.c.b16 %v827, %v823
        %v964 = vpack.c.b16 %v828, %v824
        %v965 = vpack.c.b16 %v829, %v825
        %v966 = vpack.c.b16 %v834, %v830
        %v967 = vpack.c.b16 %v835, %v831
        %v968 = vpack.c.b16 %v836, %v832
        %v969 = vpack.c.b16 %v837, %v833
        %v970 = vpack.c.b16 %v842, %v838
        %v971 = vpack.c.b16 %v843, %v839
        %v972 = vpack.c.b16 %v844, %v840
        %v973 = vpack.c.b16 %v845, %v841
        %v974 = vpack.c.b16 %v850, %v846
        %v975 = vpack.c.b16 %v851, %v847
        %v976 = vpack.c.b16 %v852, %v848
        %v977 = vpack.c.b16 %v853, %v849
        %v978 = vpack.c.b16 %v858, %v854
        %v979 = vpack.c.b16 %v859, %v855
        %v980 = vpack.c.b16 %v860, %v856
        %v981 = vpack.c.b16 %v861, %v857
        %v982 = vpack.c.b16 %v866, %v862
        %v983 = vpack.c.b16 %v867, %v863
        %v984 = vpack.c.b16 %v868, %v864
        %v985 = vpack.c.b16 %v869, %v865
        %v986 = vpack.c.b16 %v874, %v870
        %v987 = vpack.c.b16 %v875, %v871
        %v988 = vpack.c.b16 %v876, %v872
        %v989 = vpack.c.b16 %v877, %v873
        %v990 = vpack.c.b16 %v882, %v878
        %v991 = vpack.c.b16 %v883, %v879
        %v992 = vpack.c.b16 %v884, %v880
        %v993 = vpack.c.b16 %v885, %v881
        %v994 = vpack.c.b16 %v890, %v886
        %v995 = vpack.c.b16 %v891, %v887
        %v996 = vpack.c.b16 %v892, %v888
        %v997 = vpack.c.b16 %v893, %v889
        %v998 = vpack.c.b16 %v898, %v894
        %v999 = vpack.c.b16 %v899, %v895
        %v1000 = vpack.c.b16 %v900, %v896
        %v1001 = vpack.c.b16 %v901, %v897
        %v1002 = vpack.c.b16 %v906, %v902
        %v1003 = vpack.c.b16 %v907, %v903
        %v1004 = vpack.c.b16 %v908, %v904
        %v1005 = vpack.c.b16 %v909, %v905
        %1102 = vmatpush.bf16.msra.mxu0 %v938
        %1103 = vmatpush.bf16.msra.mxu0 %v934
        %1104 = vmatpush.bf16.msra.mxu0 %v930
        %1105 = vmatpush.bf16.msra.mxu0 %v926
        %1106 = vmatpush.bf16.msra.mxu0 %v922
        %1107 = vmatpush.bf16.msra.mxu0 %v918
        %1108 = vmatpush.bf16.msra.mxu0 %v914
        %1109 = vmatpush.bf16.msra.mxu0 %v910
        %1110 = vmatmul.bf16.gmra.mxu0 %v513
        %v1111 = vpop.f32.mrf.mxu0
        %v1112 = vadd.f32 %v614, %v1111
        %v1113 = vpop.f32.mrf.mxu0
        %v1114 = vadd.f32 %v614, %v1113
        %1115 = vdwg.mxu0
        %1116 = vmatpush.bf16.msra.mxu0 %v970
        %1117 = vmatpush.bf16.msra.mxu0 %v966
        %1118 = vmatpush.bf16.msra.mxu0 %v962
        %1119 = vmatpush.bf16.msra.mxu0 %v958
        %1120 = vmatpush.bf16.msra.mxu0 %v954
        %1121 = vmatpush.bf16.msra.mxu0 %v950
        %1122 = vmatpush.bf16.msra.mxu0 %v946
        %1123 = vmatpush.bf16.msra.mxu0 %v942
        %1124 = vmatmul.bf16.gmra.mxu0 %v514
        %v1125 = vpop.f32.mrf.mxu0
        %v1126 = vadd.f32 %v1112, %v1125
        %v1127 = vpop.f32.mrf.mxu0
        %v1128 = vadd.f32 %v1114, %v1127
        %1129 = vdwg.mxu0
        %1130 = vmatpush.bf16.msra.mxu0 %v1002
        %1131 = vmatpush.bf16.msra.mxu0 %v998
        %1132 = vmatpush.bf16.msra.mxu0 %v994
        %1133 = vmatpush.bf16.msra.mxu0 %v990
        %1134 = vmatpush.bf16.msra.mxu0 %v986
        %1135 = vmatpush.bf16.msra.mxu0 %v982
        %1136 = vmatpush.bf16.msra.mxu0 %v978
        %1137 = vmatpush.bf16.msra.mxu0 %v974
        %1138 = vmatmul.bf16.gmra.mxu0 %v515
        %v1139 = vpop.f32.mrf.mxu0
        %v1140 = vadd.f32 %v1126, %v1139
        %v1141 = vpop.f32.mrf.mxu0
        %v1142 = vadd.f32 %v1128, %v1141
        %1143 = vdwg.mxu0
        %1144 = vmatpush.bf16.msra.mxu0 %v939
        %1145 = vmatpush.bf16.msra.mxu0 %v935
        %1146 = vmatpush.bf16.msra.mxu0 %v931
        %1147 = vmatpush.bf16.msra.mxu0 %v927
        %1148 = vmatpush.bf16.msra.mxu0 %v923
        %1149 = vmatpush.bf16.msra.mxu0 %v919
        %1150 = vmatpush.bf16.msra.mxu0 %v915
        %1151 = vmatpush.bf16.msra.mxu0 %v911
        %1152 = vmatmul.bf16.gmra.mxu0 %v513
        %v1153 = vpop.f32.mrf.mxu0
        %v1154 = vadd.f32 %v615, %v1153
        %v1155 = vpop.f32.mrf.mxu0
        %v1156 = vadd.f32 %v615, %v1155
        %1157 = vdwg.mxu0
        %1158 = vmatpush.bf16.msra.mxu0 %v971
        %1159 = vmatpush.bf16.msra.mxu0 %v967
        %1160 = vmatpush.bf16.msra.mxu0 %v963
        %1161 = vmatpush.bf16.msra.mxu0 %v959
        %1162 = vmatpush.bf16.msra.mxu0 %v955
        %1163 = vmatpush.bf16.msra.mxu0 %v951
        %1164 = vmatpush.bf16.msra.mxu0 %v947
        %1165 = vmatpush.bf16.msra.mxu0 %v943
        %1166 = vmatmul.bf16.gmra.mxu0 %v514
        %v1167 = vpop.f32.mrf.mxu0
        %v1168 = vadd.f32 %v1154, %v1167
        %v1169 = vpop.f32.mrf.mxu0
        %v1170 = vadd.f32 %v1156, %v1169
        %1171 = vdwg.mxu0
        %1172 = vmatpush.bf16.msra.mxu0 %v1003
        %1173 = vmatpush.bf16.msra.mxu0 %v999
        %1174 = vmatpush.bf16.msra.mxu0 %v995
        %1175 = vmatpush.bf16.msra.mxu0 %v991
        %1176 = vmatpush.bf16.msra.mxu0 %v987
        %1177 = vmatpush.bf16.msra.mxu0 %v983
        %1178 = vmatpush.bf16.msra.mxu0 %v979
        %1179 = vmatpush.bf16.msra.mxu0 %v975
        %1180 = vmatmul.bf16.gmra.mxu0 %v515
        %v1181 = vpop.f32.mrf.mxu0
        %v1182 = vadd.f32 %v1168, %v1181
        %v1183 = vpop.f32.mrf.mxu0
        %v1184 = vadd.f32 %v1170, %v1183
        %1185 = vdwg.mxu0
        %1186 = vmatpush.bf16.msra.mxu0 %v940
        %1187 = vmatpush.bf16.msra.mxu0 %v936
        %1188 = vmatpush.bf16.msra.mxu0 %v932
        %1189 = vmatpush.bf16.msra.mxu0 %v928
        %1190 = vmatpush.bf16.msra.mxu0 %v924
        %1191 = vmatpush.bf16.msra.mxu0 %v920
        %1192 = vmatpush.bf16.msra.mxu0 %v916
        %1193 = vmatpush.bf16.msra.mxu0 %v912
        %1194 = vmatmul.bf16.gmra.mxu0 %v513
        %v1195 = vpop.f32.mrf.mxu0
        %v1196 = vadd.f32 %v616, %v1195
        %v1197 = vpop.f32.mrf.mxu0
        %v1198 = vadd.f32 %v616, %v1197
        %1199 = vdwg.mxu0
        %1200 = vmatpush.bf16.msra.mxu0 %v972
        %1201 = vmatpush.bf16.msra.mxu0 %v968
        %1202 = vmatpush.bf16.msra.mxu0 %v964
        %1203 = vmatpush.bf16.msra.mxu0 %v960
        %1204 = vmatpush.bf16.msra.mxu0 %v956
        %1205 = vmatpush.bf16.msra.mxu0 %v952
        %1206 = vmatpush.bf16.msra.mxu0 %v948
        %1207 = vmatpush.bf16.msra.mxu0 %v944
        %1208 = vmatmul.bf16.gmra.mxu0 %v514
        %v1209 = vpop.f32.mrf.mxu0
        %v1210 = vadd.f32 %v1196, %v1209
        %v1211 = vpop.f32.mrf.mxu0
        %v1212 = vadd.f32 %v1198, %v1211
        %1213 = vdwg.mxu0
        %1214 = vmatpush.bf16.msra.mxu0 %v1004
        %1215 = vmatpush.bf16.msra.mxu0 %v1000
        %1216 = vmatpush.bf16.msra.mxu0 %v996
        %1217 = vmatpush.bf16.msra.mxu0 %v992
        %1218 = vmatpush.bf16.msra.mxu0 %v988
        %1219 = vmatpush.bf16.msra.mxu0 %v984
        %1220 = vmatpush.bf16.msra.mxu0 %v980
        %1221 = vmatpush.bf16.msra.mxu0 %v976
        %1222 = vmatmul.bf16.gmra.mxu0 %v515
        %v1223 = vpop.f32.mrf.mxu0
        %v1224 = vadd.f32 %v1210, %v1223
        %v1225 = vpop.f32.mrf.mxu0
        %v1226 = vadd.f32 %v1212, %v1225
        %1227 = vdwg.mxu0
        %1228 = vmatpush.bf16.msra.mxu0 %v941
        %1229 = vmatpush.bf16.msra.mxu0 %v937
        %1230 = vmatpush.bf16.msra.mxu0 %v933
        %1231 = vmatpush.bf16.msra.mxu0 %v929
        %1232 = vmatpush.bf16.msra.mxu0 %v925
        %1233 = vmatpush.bf16.msra.mxu0 %v921
        %1234 = vmatpush.bf16.msra.mxu0 %v917
        %1235 = vmatpush.bf16.msra.mxu0 %v913
        %1236 = vmatmul.bf16.gmra.mxu0 %v513
        %v1237 = vpop.f32.mrf.mxu0
        %v1238 = vadd.f32 %v617, %v1237
        %v1239 = vpop.f32.mrf.mxu0
        %v1240 = vadd.f32 %v617, %v1239
        %1241 = vdwg.mxu0
        %1242 = vmatpush.bf16.msra.mxu0 %v973
        %1243 = vmatpush.bf16.msra.mxu0 %v969
        %1244 = vmatpush.bf16.msra.mxu0 %v965
        %1245 = vmatpush.bf16.msra.mxu0 %v961
        %1246 = vmatpush.bf16.msra.mxu0 %v957
        %1247 = vmatpush.bf16.msra.mxu0 %v953
        %1248 = vmatpush.bf16.msra.mxu0 %v949
        %1249 = vmatpush.bf16.msra.mxu0 %v945
        %1250 = vmatmul.bf16.gmra.mxu0 %v514
        %v1251 = vpop.f32.mrf.mxu0
        %v1252 = vadd.f32 %v1238, %v1251
        %v1253 = vpop.f32.mrf.mxu0
        %v1254 = vadd.f32 %v1240, %v1253
        %1255 = vdwg.mxu0
        %1256 = vmatpush.bf16.msra.mxu0 %v1005
        %1257 = vmatpush.bf16.msra.mxu0 %v1001
        %1258 = vmatpush.bf16.msra.mxu0 %v997
        %1259 = vmatpush.bf16.msra.mxu0 %v993
        %1260 = vmatpush.bf16.msra.mxu0 %v989
        %1261 = vmatpush.bf16.msra.mxu0 %v985
        %1262 = vmatpush.bf16.msra.mxu0 %v981
        %1263 = vmatpush.bf16.msra.mxu0 %v977
        %1264 = vmatmul.bf16.gmra.mxu0 %v515
        %v1265 = vpop.f32.mrf.mxu0
        %v1266 = vadd.f32 %v1252, %v1265
        %v1267 = vpop.f32.mrf.mxu0
        %v1268 = vadd.f32 %v1254, %v1267
        %1269 = vdwg.mxu0
        %v1270 = vmax.f32 %v1140, 0.0
        %v1271 = vmax.f32 %v1182, 0.0
        %v1272 = vmax.f32 %v1224, 0.0
        %v1273 = vmax.f32 %v1266, 0.0
        %v1274 = vmax.f32 %v1142, 0.0
        %v1275 = vmax.f32 %v1184, 0.0
        %v1276 = vmax.f32 %v1226, 0.0
        %v1277 = vmax.f32 %v1268, 0.0
        %v1278 = vpack.c.bf16 %v1274, %v1270
        %v1279 = vpack.c.bf16 %v1275, %v1271
        %v1280 = vpack.c.bf16 %v1276, %v1272
        %v1281 = vpack.c.bf16 %v1277, %v1273
        %v1282 = vld [vmem:[#allocation5] sm:$0xff]
        %v1283 = vld [vmem:[#allocation5 + $0x8] sm:$0xff]
        %v1284 = vld [vmem:[#allocation5 + $0x10] sm:$0xff]
        %v1285 = vld [vmem:[#allocation5 + $0x18] sm:$0xff]
        %v1286 = vld [vmem:[#allocation5 + $0x20] sm:$0xff]
        %v1287 = vld [vmem:[#allocation5 + $0x28] sm:$0xff]
        %v1288 = vld [vmem:[#allocation5 + $0x30] sm:$0xff]
        %v1289 = vld [vmem:[#allocation5 + $0x38] sm:$0xff]
        %v1290 = vld [vmem:[#allocation5 + $0x40] sm:$0xff]
        %v1291 = vld [vmem:[#allocation5 + $0x48] sm:$0xff]
        %v1292 = vld [vmem:[#allocation5 + $0x50] sm:$0xff]
        %v1293 = vld [vmem:[#allocation5 + $0x58] sm:$0xff]
        %v1294 = vld [vmem:[#allocation5 + $0x60] sm:$0xff]
        %v1295 = vld [vmem:[#allocation5 + $0x68] sm:$0xff]
        %v1296 = vld [vmem:[#allocation5 + $0x70] sm:$0xff]
        %v1297 = vld [vmem:[#allocation5 + $0x78] sm:$0xff]
        %v1298 = vld [vmem:[#allocation5 + $0x80] sm:$0xff]
        %v1299 = vld [vmem:[#allocation5 + $0x88] sm:$0xff]
        %v1300 = vld [vmem:[#allocation5 + $0x90] sm:$0xff]
        %v1301 = vld [vmem:[#allocation5 + $0x98] sm:$0xff]
        %v1302 = vld [vmem:[#allocation5 + $0xa0] sm:$0xff]
        %v1303 = vld [vmem:[#allocation5 + $0xa8] sm:$0xff]
        %v1304 = vld [vmem:[#allocation5 + $0xb0] sm:$0xff]
        %v1305 = vld [vmem:[#allocation5 + $0xb8] sm:$0xff]
        %v1306 = vld [vmem:[#allocation5 + $0xc0] sm:$0xff]
        %v1307 = vld [vmem:[#allocation5 + $0xc8] sm:$0xff]
        %v1308 = vld [vmem:[#allocation5 + $0xd0] sm:$0xff]
        %v1309 = vld [vmem:[#allocation5 + $0xd8] sm:$0xff]
        %v1310 = vld [vmem:[#allocation5 + $0xe0] sm:$0xff]
        %v1311 = vld [vmem:[#allocation5 + $0xe8] sm:$0xff]
        %v1312 = vld [vmem:[#allocation5 + $0xf0] sm:$0xff]
        %v1313 = vld [vmem:[#allocation5 + $0xf8] sm:$0xff]
        %v1314 = vld [vmem:[#allocation5 + $0x100] sm:$0xff]
        %v1315 = vld [vmem:[#allocation5 + $0x108] sm:$0xff]
        %v1316 = vld [vmem:[#allocation5 + $0x110] sm:$0xff]
        %v1317 = vld [vmem:[#allocation5 + $0x118] sm:$0xff]
        %v1318 = vld [vmem:[#allocation5 + $0x120] sm:$0xff]
        %v1319 = vld [vmem:[#allocation5 + $0x128] sm:$0xff]
        %v1320 = vld [vmem:[#allocation5 + $0x130] sm:$0xff]
        %v1321 = vld [vmem:[#allocation5 + $0x138] sm:$0xff]
        %v1322 = vld [vmem:[#allocation5 + $0x140] sm:$0xff]
        %v1323 = vld [vmem:[#allocation5 + $0x148] sm:$0xff]
        %v1324 = vld [vmem:[#allocation5 + $0x150] sm:$0xff]
        %v1325 = vld [vmem:[#allocation5 + $0x158] sm:$0xff]
        %v1326 = vld [vmem:[#allocation5 + $0x160] sm:$0xff]
        %v1327 = vld [vmem:[#allocation5 + $0x168] sm:$0xff]
        %v1328 = vld [vmem:[#allocation5 + $0x170] sm:$0xff]
        %v1329 = vld [vmem:[#allocation5 + $0x178] sm:$0xff]
        %v1330 = vld [vmem:[#allocation5 + $0x180] sm:$0xff]
        %v1331 = vld [vmem:[#allocation5 + $0x188] sm:$0xff]
        %v1332 = vld [vmem:[#allocation5 + $0x190] sm:$0xff]
        %v1333 = vld [vmem:[#allocation5 + $0x198] sm:$0xff]
        %v1334 = vld [vmem:[#allocation5 + $0x1a0] sm:$0xff]
        %v1335 = vld [vmem:[#allocation5 + $0x1a8] sm:$0xff]
        %v1336 = vld [vmem:[#allocation5 + $0x1b0] sm:$0xff]
        %v1337 = vld [vmem:[#allocation5 + $0x1b8] sm:$0xff]
        %v1338 = vld [vmem:[#allocation5 + $0x1c0] sm:$0xff]
        %v1339 = vld [vmem:[#allocation5 + $0x1c8] sm:$0xff]
        %v1340 = vld [vmem:[#allocation5 + $0x1d0] sm:$0xff]
        %v1341 = vld [vmem:[#allocation5 + $0x1d8] sm:$0xff]
        %v1342 = vld [vmem:[#allocation5 + $0x1e0] sm:$0xff]
        %v1343 = vld [vmem:[#allocation5 + $0x1e8] sm:$0xff]
        %v1344 = vld [vmem:[#allocation5 + $0x1f0] sm:$0xff]
        %v1345 = vld [vmem:[#allocation5 + $0x1f8] sm:$0xff]
        %v1346 = vld [vmem:[%s4] sm:$0x3]
        %v1348 = vperm.slane %v1346, 0
        %v1349 = vperm.slane %v1346, 1
        %v1416 = vunpack.c.l.b16 %v1282
        %v1417 = vunpack.c.h.b16 %v1282
        %v1418 = vunpack.c.l.b16 %v1283
        %v1419 = vunpack.c.h.b16 %v1283
        %v1420 = vunpack.c.l.b16 %v1284
        %v1421 = vunpack.c.h.b16 %v1284
        %v1422 = vunpack.c.l.b16 %v1285
        %v1423 = vunpack.c.h.b16 %v1285
        %v1424 = vunpack.c.l.b16 %v1286
        %v1425 = vunpack.c.h.b16 %v1286
        %v1426 = vunpack.c.l.b16 %v1287
        %v1427 = vunpack.c.h.b16 %v1287
        %v1428 = vunpack.c.l.b16 %v1288
        %v1429 = vunpack.c.h.b16 %v1288
        %v1430 = vunpack.c.l.b16 %v1289
        %v1431 = vunpack.c.h.b16 %v1289
        %v1432 = vunpack.c.l.b16 %v1290
        %v1433 = vunpack.c.h.b16 %v1290
        %v1434 = vunpack.c.l.b16 %v1291
        %v1435 = vunpack.c.h.b16 %v1291
        %v1436 = vunpack.c.l.b16 %v1292
        %v1437 = vunpack.c.h.b16 %v1292
        %v1438 = vunpack.c.l.b16 %v1293
        %v1439 = vunpack.c.h.b16 %v1293
        %v1440 = vunpack.c.l.b16 %v1294
        %v1441 = vunpack.c.h.b16 %v1294
        %v1442 = vunpack.c.l.b16 %v1295
        %v1443 = vunpack.c.h.b16 %v1295
        %v1444 = vunpack.c.l.b16 %v1296
        %v1445 = vunpack.c.h.b16 %v1296
        %v1446 = vunpack.c.l.b16 %v1297
        %v1447 = vunpack.c.h.b16 %v1297
        %v1448 = vunpack.c.l.b16 %v1298
        %v1449 = vunpack.c.h.b16 %v1298
        %v1450 = vunpack.c.l.b16 %v1299
        %v1451 = vunpack.c.h.b16 %v1299
        %v1452 = vunpack.c.l.b16 %v1300
        %v1453 = vunpack.c.h.b16 %v1300
        %v1454 = vunpack.c.l.b16 %v1301
        %v1455 = vunpack.c.h.b16 %v1301
        %v1456 = vunpack.c.l.b16 %v1302
        %v1457 = vunpack.c.h.b16 %v1302
        %v1458 = vunpack.c.l.b16 %v1303
        %v1459 = vunpack.c.h.b16 %v1303
        %v1460 = vunpack.c.l.b16 %v1304
        %v1461 = vunpack.c.h.b16 %v1304
        %v1462 = vunpack.c.l.b16 %v1305
        %v1463 = vunpack.c.h.b16 %v1305
        %v1464 = vunpack.c.l.b16 %v1306
        %v1465 = vunpack.c.h.b16 %v1306
        %v1466 = vunpack.c.l.b16 %v1307
        %v1467 = vunpack.c.h.b16 %v1307
        %v1468 = vunpack.c.l.b16 %v1308
        %v1469 = vunpack.c.h.b16 %v1308
        %v1470 = vunpack.c.l.b16 %v1309
        %v1471 = vunpack.c.h.b16 %v1309
        %v1472 = vunpack.c.l.b16 %v1310
        %v1473 = vunpack.c.h.b16 %v1310
        %v1474 = vunpack.c.l.b16 %v1311
        %v1475 = vunpack.c.h.b16 %v1311
        %v1476 = vunpack.c.l.b16 %v1312
        %v1477 = vunpack.c.h.b16 %v1312
        %v1478 = vunpack.c.l.b16 %v1313
        %v1479 = vunpack.c.h.b16 %v1313
        %v1480 = vunpack.c.l.b16 %v1314
        %v1481 = vunpack.c.h.b16 %v1314
        %v1482 = vunpack.c.l.b16 %v1315
        %v1483 = vunpack.c.h.b16 %v1315
        %v1484 = vunpack.c.l.b16 %v1316
        %v1485 = vunpack.c.h.b16 %v1316
        %v1486 = vunpack.c.l.b16 %v1317
        %v1487 = vunpack.c.h.b16 %v1317
        %v1488 = vunpack.c.l.b16 %v1318
        %v1489 = vunpack.c.h.b16 %v1318
        %v1490 = vunpack.c.l.b16 %v1319
        %v1491 = vunpack.c.h.b16 %v1319
        %v1492 = vunpack.c.l.b16 %v1320
        %v1493 = vunpack.c.h.b16 %v1320
        %v1494 = vunpack.c.l.b16 %v1321
        %v1495 = vunpack.c.h.b16 %v1321
        %v1496 = vunpack.c.l.b16 %v1322
        %v1497 = vunpack.c.h.b16 %v1322
        %v1498 = vunpack.c.l.b16 %v1323
        %v1499 = vunpack.c.h.b16 %v1323
        %v1500 = vunpack.c.l.b16 %v1324
        %v1501 = vunpack.c.h.b16 %v1324
        %v1502 = vunpack.c.l.b16 %v1325
        %v1503 = vunpack.c.h.b16 %v1325
        %v1504 = vunpack.c.l.b16 %v1326
        %v1505 = vunpack.c.h.b16 %v1326
        %v1506 = vunpack.c.l.b16 %v1327
        %v1507 = vunpack.c.h.b16 %v1327
        %v1508 = vunpack.c.l.b16 %v1328
        %v1509 = vunpack.c.h.b16 %v1328
        %v1510 = vunpack.c.l.b16 %v1329
        %v1511 = vunpack.c.h.b16 %v1329
        %v1512 = vunpack.c.l.b16 %v1330
        %v1513 = vunpack.c.h.b16 %v1330
        %v1514 = vunpack.c.l.b16 %v1331
        %v1515 = vunpack.c.h.b16 %v1331
        %v1516 = vunpack.c.l.b16 %v1332
        %v1517 = vunpack.c.h.b16 %v1332
        %v1518 = vunpack.c.l.b16 %v1333
        %v1519 = vunpack.c.h.b16 %v1333
        %v1520 = vunpack.c.l.b16 %v1334
        %v1521 = vunpack.c.h.b16 %v1334
        %v1522 = vunpack.c.l.b16 %v1335
        %v1523 = vunpack.c.h.b16 %v1335
        %v1524 = vunpack.c.l.b16 %v1336
        %v1525 = vunpack.c.h.b16 %v1336
        %v1526 = vunpack.c.l.b16 %v1337
        %v1527 = vunpack.c.h.b16 %v1337
        %v1528 = vunpack.c.l.b16 %v1338
        %v1529 = vunpack.c.h.b16 %v1338
        %v1530 = vunpack.c.l.b16 %v1339
        %v1531 = vunpack.c.h.b16 %v1339
        %v1532 = vunpack.c.l.b16 %v1340
        %v1533 = vunpack.c.h.b16 %v1340
        %v1534 = vunpack.c.l.b16 %v1341
        %v1535 = vunpack.c.h.b16 %v1341
        %v1536 = vunpack.c.l.b16 %v1342
        %v1537 = vunpack.c.h.b16 %v1342
        %v1538 = vunpack.c.l.b16 %v1343
        %v1539 = vunpack.c.h.b16 %v1343
        %v1540 = vunpack.c.l.b16 %v1344
        %v1541 = vunpack.c.h.b16 %v1344
        %v1542 = vunpack.c.l.b16 %v1345
        %v1543 = vunpack.c.h.b16 %v1345
        %v1544 = vpack.c.b16 %v1418, %v1416
        %v1545 = vpack.c.b16 %v1419, %v1417
        %v1546 = vpack.c.b16 %v1422, %v1420
        %v1547 = vpack.c.b16 %v1423, %v1421
        %v1548 = vpack.c.b16 %v1426, %v1424
        %v1549 = vpack.c.b16 %v1427, %v1425
        %v1550 = vpack.c.b16 %v1430, %v1428
        %v1551 = vpack.c.b16 %v1431, %v1429
        %v1552 = vpack.c.b16 %v1434, %v1432
        %v1553 = vpack.c.b16 %v1435, %v1433
        %v1554 = vpack.c.b16 %v1438, %v1436
        %v1555 = vpack.c.b16 %v1439, %v1437
        %v1556 = vpack.c.b16 %v1442, %v1440
        %v1557 = vpack.c.b16 %v1443, %v1441
        %v1558 = vpack.c.b16 %v1446, %v1444
        %v1559 = vpack.c.b16 %v1447, %v1445
        %v1560 = vpack.c.b16 %v1450, %v1448
        %v1561 = vpack.c.b16 %v1451, %v1449
        %v1562 = vpack.c.b16 %v1454, %v1452
        %v1563 = vpack.c.b16 %v1455, %v1453
        %v1564 = vpack.c.b16 %v1458, %v1456
        %v1565 = vpack.c.b16 %v1459, %v1457
        %v1566 = vpack.c.b16 %v1462, %v1460
        %v1567 = vpack.c.b16 %v1463, %v1461
        %v1568 = vpack.c.b16 %v1466, %v1464
        %v1569 = vpack.c.b16 %v1467, %v1465
        %v1570 = vpack.c.b16 %v1470, %v1468
        %v1571 = vpack.c.b16 %v1471, %v1469
        %v1572 = vpack.c.b16 %v1474, %v1472
        %v1573 = vpack.c.b16 %v1475, %v1473
        %v1574 = vpack.c.b16 %v1478, %v1476
        %v1575 = vpack.c.b16 %v1479, %v1477
        %v1576 = vpack.c.b16 %v1482, %v1480
        %v1577 = vpack.c.b16 %v1483, %v1481
        %v1578 = vpack.c.b16 %v1486, %v1484
        %v1579 = vpack.c.b16 %v1487, %v1485
        %v1580 = vpack.c.b16 %v1490, %v1488
        %v1581 = vpack.c.b16 %v1491, %v1489
        %v1582 = vpack.c.b16 %v1494, %v1492
        %v1583 = vpack.c.b16 %v1495, %v1493
        %v1584 = vpack.c.b16 %v1498, %v1496
        %v1585 = vpack.c.b16 %v1499, %v1497
        %v1586 = vpack.c.b16 %v1502, %v1500
        %v1587 = vpack.c.b16 %v1503, %v1501
        %v1588 = vpack.c.b16 %v1506, %v1504
        %v1589 = vpack.c.b16 %v1507, %v1505
        %v1590 = vpack.c.b16 %v1510, %v1508
        %v1591 = vpack.c.b16 %v1511, %v1509
        %v1592 = vpack.c.b16 %v1514, %v1512
        %v1593 = vpack.c.b16 %v1515, %v1513
        %v1594 = vpack.c.b16 %v1518, %v1516
        %v1595 = vpack.c.b16 %v1519, %v1517
        %v1596 = vpack.c.b16 %v1522, %v1520
        %v1597 = vpack.c.b16 %v1523, %v1521
        %v1598 = vpack.c.b16 %v1526, %v1524
        %v1599 = vpack.c.b16 %v1527, %v1525
        %v1600 = vpack.c.b16 %v1530, %v1528
        %v1601 = vpack.c.b16 %v1531, %v1529
        %v1602 = vpack.c.b16 %v1534, %v1532
        %v1603 = vpack.c.b16 %v1535, %v1533
        %v1604 = vpack.c.b16 %v1538, %v1536
        %v1605 = vpack.c.b16 %v1539, %v1537
        %v1606 = vpack.c.b16 %v1542, %v1540
        %v1607 = vpack.c.b16 %v1543, %v1541
        %1672 = vmatpush.bf16.msra.mxu0 %v1558
        %1673 = vmatpush.bf16.msra.mxu0 %v1556
        %1674 = vmatpush.bf16.msra.mxu0 %v1554
        %1675 = vmatpush.bf16.msra.mxu0 %v1552
        %1676 = vmatpush.bf16.msra.mxu0 %v1550
        %1677 = vmatpush.bf16.msra.mxu0 %v1548
        %1678 = vmatpush.bf16.msra.mxu0 %v1546
        %1679 = vmatpush.bf16.msra.mxu0 %v1544
        %1680 = vmatmul.bf16.gmra.mxu0 %v1278
        %v1681 = vpop.f32.mrf.mxu0
        %v1682 = vadd.f32 %v1348, %v1681
        %v1683 = vpop.f32.mrf.mxu0
        %v1684 = vadd.f32 %v1348, %v1683
        %1685 = vdwg.mxu0
        %1686 = vmatpush.bf16.msra.mxu0 %v1574
        %1687 = vmatpush.bf16.msra.mxu0 %v1572
        %1688 = vmatpush.bf16.msra.mxu0 %v1570
        %1689 = vmatpush.bf16.msra.mxu0 %v1568
        %1690 = vmatpush.bf16.msra.mxu0 %v1566
        %1691 = vmatpush.bf16.msra.mxu0 %v1564
        %1692 = vmatpush.bf16.msra.mxu0 %v1562
        %1693 = vmatpush.bf16.msra.mxu0 %v1560
        %1694 = vmatmul.bf16.gmra.mxu0 %v1279
        %v1695 = vpop.f32.mrf.mxu0
        %v1696 = vadd.f32 %v1682, %v1695
        %v1697 = vpop.f32.mrf.mxu0
        %v1698 = vadd.f32 %v1684, %v1697
        %1699 = vdwg.mxu0
        %1700 = vmatpush.bf16.msra.mxu0 %v1590
        %1701 = vmatpush.bf16.msra.mxu0 %v1588
        %1702 = vmatpush.bf16.msra.mxu0 %v1586
        %1703 = vmatpush.bf16.msra.mxu0 %v1584
        %1704 = vmatpush.bf16.msra.mxu0 %v1582
        %1705 = vmatpush.bf16.msra.mxu0 %v1580
        %1706 = vmatpush.bf16.msra.mxu0 %v1578
        %1707 = vmatpush.bf16.msra.mxu0 %v1576
        %1708 = vmatmul.bf16.gmra.mxu0 %v1280
        %v1709 = vpop.f32.mrf.mxu0
        %v1710 = vadd.f32 %v1696, %v1709
        %v1711 = vpop.f32.mrf.mxu0
        %v1712 = vadd.f32 %v1698, %v1711
        %1713 = vdwg.mxu0
        %1714 = vmatpush.bf16.msra.mxu0 %v1606
        %1715 = vmatpush.bf16.msra.mxu0 %v1604
        %1716 = vmatpush.bf16.msra.mxu0 %v1602
        %1717 = vmatpush.bf16.msra.mxu0 %v1600
        %1718 = vmatpush.bf16.msra.mxu0 %v1598
        %1719 = vmatpush.bf16.msra.mxu0 %v1596
        %1720 = vmatpush.bf16.msra.mxu0 %v1594
        %1721 = vmatpush.bf16.msra.mxu0 %v1592
        %1722 = vmatmul.bf16.gmra.mxu0 %v1281
        %v1723 = vpop.f32.mrf.mxu0
        %v1724 = vadd.f32 %v1710, %v1723
        %v1725 = vpop.f32.mrf.mxu0
        %v1726 = vadd.f32 %v1712, %v1725
        %1727 = vdwg.mxu0
        %1728 = vmatpush.bf16.msra.mxu0 %v1559
        %1729 = vmatpush.bf16.msra.mxu0 %v1557
        %1730 = vmatpush.bf16.msra.mxu0 %v1555
        %1731 = vmatpush.bf16.msra.mxu0 %v1553
        %1732 = vmatpush.bf16.msra.mxu0 %v1551
        %1733 = vmatpush.bf16.msra.mxu0 %v1549
        %1734 = vmatpush.bf16.msra.mxu0 %v1547
        %1735 = vmatpush.bf16.msra.mxu0 %v1545
        %1736 = vmatmul.bf16.gmra.mxu0 %v1278
        %v1737 = vpop.f32.mrf.mxu0
        %v1738 = vadd.f32 %v1349, %v1737
        %v1739 = vpop.f32.mrf.mxu0
        %v1740 = vadd.f32 %v1349, %v1739
        %1741 = vdwg.mxu0
        %1742 = vmatpush.bf16.msra.mxu0 %v1575
        %1743 = vmatpush.bf16.msra.mxu0 %v1573
        %1744 = vmatpush.bf16.msra.mxu0 %v1571
        %1745 = vmatpush.bf16.msra.mxu0 %v1569
        %1746 = vmatpush.bf16.msra.mxu0 %v1567
        %1747 = vmatpush.bf16.msra.mxu0 %v1565
        %1748 = vmatpush.bf16.msra.mxu0 %v1563
        %1749 = vmatpush.bf16.msra.mxu0 %v1561
        %1750 = vmatmul.bf16.gmra.mxu0 %v1279
        %v1751 = vpop.f32.mrf.mxu0
        %v1752 = vadd.f32 %v1738, %v1751
        %v1753 = vpop.f32.mrf.mxu0
        %v1754 = vadd.f32 %v1740, %v1753
        %1755 = vdwg.mxu0
        %1756 = vmatpush.bf16.msra.mxu0 %v1591
        %1757 = vmatpush.bf16.msra.mxu0 %v1589
        %1758 = vmatpush.bf16.msra.mxu0 %v1587
        %1759 = vmatpush.bf16.msra.mxu0 %v1585
        %1760 = vmatpush.bf16.msra.mxu0 %v1583
        %1761 = vmatpush.bf16.msra.mxu0 %v1581
        %1762 = vmatpush.bf16.msra.mxu0 %v1579
        %1763 = vmatpush.bf16.msra.mxu0 %v1577
        %1764 = vmatmul.bf16.gmra.mxu0 %v1280
        %v1765 = vpop.f32.mrf.mxu0
        %v1766 = vadd.f32 %v1752, %v1765
        %v1767 = vpop.f32.mrf.mxu0
        %v1768 = vadd.f32 %v1754, %v1767
        %1769 = vdwg.mxu0
        %1770 = vmatpush.bf16.msra.mxu0 %v1607
        %1771 = vmatpush.bf16.msra.mxu0 %v1605
        %1772 = vmatpush.bf16.msra.mxu0 %v1603
        %1773 = vmatpush.bf16.msra.mxu0 %v1601
        %1774 = vmatpush.bf16.msra.mxu0 %v1599
        %1775 = vmatpush.bf16.msra.mxu0 %v1597
        %1776 = vmatpush.bf16.msra.mxu0 %v1595
        %1777 = vmatpush.bf16.msra.mxu0 %v1593
        %1778 = vmatmul.bf16.gmra.mxu0 %v1281
        %v1779 = vpop.f32.mrf.mxu0
        %v1780 = vadd.f32 %v1766, %v1779
        %v1781 = vpop.f32.mrf.mxu0
        %v1782 = vadd.f32 %v1768, %v1781
        %1783 = vdwg.mxu0
        %v1784 = vmax.f32 %v1724, 0.0
        %v1785 = vmax.f32 %v1780, 0.0
        %v1786 = vmax.f32 %v1726, 0.0
        %v1787 = vmax.f32 %v1782, 0.0
        %v1788 = vpack.c.bf16 %v1786, %v1784
        %v1789 = vpack.c.bf16 %v1787, %v1785
        %v1790 = vld [vmem:[%s5] sm:$0xff]
        %v1791 = vld [vmem:[%s5 + $0x8] sm:$0xff]
        %v1792 = vld [vmem:[%s5 + $0x10] sm:$0xff]
        %v1793 = vld [vmem:[%s5 + $0x18] sm:$0xff]
        %v1794 = vld [vmem:[%s5 + $0x20] sm:$0xff]
        %v1795 = vld [vmem:[%s5 + $0x28] sm:$0xff]
        %v1796 = vld [vmem:[%s5 + $0x30] sm:$0xff]
        %v1797 = vld [vmem:[%s5 + $0x38] sm:$0xff]
        %v1798 = vld [vmem:[%s5 + $0x40] sm:$0xff]
        %v1799 = vld [vmem:[%s5 + $0x48] sm:$0xff]
        %v1800 = vld [vmem:[%s5 + $0x50] sm:$0xff]
        %v1801 = vld [vmem:[%s5 + $0x58] sm:$0xff]
        %v1802 = vld [vmem:[%s5 + $0x60] sm:$0xff]
        %v1803 = vld [vmem:[%s5 + $0x68] sm:$0xff]
        %v1804 = vld [vmem:[%s5 + $0x70] sm:$0xff]
        %v1805 = vld [vmem:[%s5 + $0x78] sm:$0xff]
        %v1806 = vld [vmem:[%s5 + $0x80] sm:$0xff]
        %v1807 = vld [vmem:[%s5 + $0x88] sm:$0xff]
        %v1808 = vld [vmem:[%s5 + $0x90] sm:$0xff]
        %v1809 = vld [vmem:[%s5 + $0x98] sm:$0xff]
        %v1810 = vld [vmem:[%s5 + $0xa0] sm:$0xff]
        %v1811 = vld [vmem:[%s5 + $0xa8] sm:$0xff]
        %v1812 = vld [vmem:[%s5 + $0xb0] sm:$0xff]
        %v1813 = vld [vmem:[%s5 + $0xb8] sm:$0xff]
        %v1814 = vld [vmem:[%s5 + $0xc0] sm:$0xff]
        %v1815 = vld [vmem:[%s5 + $0xc8] sm:$0xff]
        %v1816 = vld [vmem:[%s5 + $0xd0] sm:$0xff]
        %v1817 = vld [vmem:[%s5 + $0xd8] sm:$0xff]
        %v1818 = vld [vmem:[%s5 + $0xe0] sm:$0xff]
        %v1819 = vld [vmem:[%s5 + $0xe8] sm:$0xff]
        %v1820 = vld [vmem:[%s5 + $0xf0] sm:$0xff]
        %v1821 = vld [vmem:[%s5 + $0xf8] sm:$0xff]
        %v1822 = vld [vmem:[%s6] sm:$0x3]
        %v1824 = vperm.slane %v1822, 0
        %v1825 = vperm.slane %v1822, 1
        %v1860 = vunpack.c.l.b16 %v1790
        %v1861 = vunpack.c.h.b16 %v1790
        %v1862 = vunpack.c.l.b16 %v1791
        %v1863 = vunpack.c.h.b16 %v1791
        %v1864 = vunpack.c.l.b16 %v1792
        %v1865 = vunpack.c.h.b16 %v1792
        %v1866 = vunpack.c.l.b16 %v1793
        %v1867 = vunpack.c.h.b16 %v1793
        %v1868 = vunpack.c.l.b16 %v1794
        %v1869 = vunpack.c.h.b16 %v1794
        %v1870 = vunpack.c.l.b16 %v1795
        %v1871 = vunpack.c.h.b16 %v1795
        %v1872 = vunpack.c.l.b16 %v1796
        %v1873 = vunpack.c.h.b16 %v1796
        %v1874 = vunpack.c.l.b16 %v1797
        %v1875 = vunpack.c.h.b16 %v1797
        %v1876 = vunpack.c.l.b16 %v1798
        %v1877 = vunpack.c.h.b16 %v1798
        %v1878 = vunpack.c.l.b16 %v1799
        %v1879 = vunpack.c.h.b16 %v1799
        %v1880 = vunpack.c.l.b16 %v1800
        %v1881 = vunpack.c.h.b16 %v1800
        %v1882 = vunpack.c.l.b16 %v1801
        %v1883 = vunpack.c.h.b16 %v1801
        %v1884 = vunpack.c.l.b16 %v1802
        %v1885 = vunpack.c.h.b16 %v1802
        %v1886 = vunpack.c.l.b16 %v1803
        %v1887 = vunpack.c.h.b16 %v1803
        %v1888 = vunpack.c.l.b16 %v1804
        %v1889 = vunpack.c.h.b16 %v1804
        %v1890 = vunpack.c.l.b16 %v1805
        %v1891 = vunpack.c.h.b16 %v1805
        %v1892 = vunpack.c.l.b16 %v1806
        %v1893 = vunpack.c.h.b16 %v1806
        %v1894 = vunpack.c.l.b16 %v1807
        %v1895 = vunpack.c.h.b16 %v1807
        %v1896 = vunpack.c.l.b16 %v1808
        %v1897 = vunpack.c.h.b16 %v1808
        %v1898 = vunpack.c.l.b16 %v1809
        %v1899 = vunpack.c.h.b16 %v1809
        %v1900 = vunpack.c.l.b16 %v1810
        %v1901 = vunpack.c.h.b16 %v1810
        %v1902 = vunpack.c.l.b16 %v1811
        %v1903 = vunpack.c.h.b16 %v1811
        %v1904 = vunpack.c.l.b16 %v1812
        %v1905 = vunpack.c.h.b16 %v1812
        %v1906 = vunpack.c.l.b16 %v1813
        %v1907 = vunpack.c.h.b16 %v1813
        %v1908 = vunpack.c.l.b16 %v1814
        %v1909 = vunpack.c.h.b16 %v1814
        %v1910 = vunpack.c.l.b16 %v1815
        %v1911 = vunpack.c.h.b16 %v1815
        %v1912 = vunpack.c.l.b16 %v1816
        %v1913 = vunpack.c.h.b16 %v1816
        %v1914 = vunpack.c.l.b16 %v1817
        %v1915 = vunpack.c.h.b16 %v1817
        %v1916 = vunpack.c.l.b16 %v1818
        %v1917 = vunpack.c.h.b16 %v1818
        %v1918 = vunpack.c.l.b16 %v1819
        %v1919 = vunpack.c.h.b16 %v1819
        %v1920 = vunpack.c.l.b16 %v1820
        %v1921 = vunpack.c.h.b16 %v1820
        %v1922 = vunpack.c.l.b16 %v1821
        %v1923 = vunpack.c.h.b16 %v1821
        %v1924 = vpack.c.b16 %v1862, %v1860
        %v1925 = vpack.c.b16 %v1863, %v1861
        %v1926 = vpack.c.b16 %v1866, %v1864
        %v1927 = vpack.c.b16 %v1867, %v1865
        %v1928 = vpack.c.b16 %v1870, %v1868
        %v1929 = vpack.c.b16 %v1871, %v1869
        %v1930 = vpack.c.b16 %v1874, %v1872
        %v1931 = vpack.c.b16 %v1875, %v1873
        %v1932 = vpack.c.b16 %v1878, %v1876
        %v1933 = vpack.c.b16 %v1879, %v1877
        %v1934 = vpack.c.b16 %v1882, %v1880
        %v1935 = vpack.c.b16 %v1883, %v1881
        %v1936 = vpack.c.b16 %v1886, %v1884
        %v1937 = vpack.c.b16 %v1887, %v1885
        %v1938 = vpack.c.b16 %v1890, %v1888
        %v1939 = vpack.c.b16 %v1891, %v1889
        %v1940 = vpack.c.b16 %v1894, %v1892
        %v1941 = vpack.c.b16 %v1895, %v1893
        %v1942 = vpack.c.b16 %v1898, %v1896
        %v1943 = vpack.c.b16 %v1899, %v1897
        %v1944 = vpack.c.b16 %v1902, %v1900
        %v1945 = vpack.c.b16 %v1903, %v1901
        %v1946 = vpack.c.b16 %v1906, %v1904
        %v1947 = vpack.c.b16 %v1907, %v1905
        %v1948 = vpack.c.b16 %v1910, %v1908
        %v1949 = vpack.c.b16 %v1911, %v1909
        %v1950 = vpack.c.b16 %v1914, %v1912
        %v1951 = vpack.c.b16 %v1915, %v1913
        %v1952 = vpack.c.b16 %v1918, %v1916
        %v1953 = vpack.c.b16 %v1919, %v1917
        %v1954 = vpack.c.b16 %v1922, %v1920
        %v1955 = vpack.c.b16 %v1923, %v1921
        %1988 = vmatpush.bf16.msra.mxu0 %v1938
        %1989 = vmatpush.bf16.msra.mxu0 %v1936
        %1990 = vmatpush.bf16.msra.mxu0 %v1934
        %1991 = vmatpush.bf16.msra.mxu0 %v1932
        %1992 = vmatpush.bf16.msra.mxu0 %v1930
        %1993 = vmatpush.bf16.msra.mxu0 %v1928
        %1994 = vmatpush.bf16.msra.mxu0 %v1926
        %1995 = vmatpush.bf16.msra.mxu0 %v1924
        %1996 = vmatmul.bf16.gmra.mxu0 %v1788
        %v1997 = vpop.f32.mrf.mxu0
        %v1998 = vadd.f32 %v1824, %v1997
        %v1999 = vpop.f32.mrf.mxu0
        %v2000 = vadd.f32 %v1824, %v1999
        %2001 = vdwg.mxu0
        %2002 = vmatpush.bf16.msra.mxu0 %v1954
        %2003 = vmatpush.bf16.msra.mxu0 %v1952
        %2004 = vmatpush.bf16.msra.mxu0 %v1950
        %2005 = vmatpush.bf16.msra.mxu0 %v1948
        %2006 = vmatpush.bf16.msra.mxu0 %v1946
        %2007 = vmatpush.bf16.msra.mxu0 %v1944
        %2008 = vmatpush.bf16.msra.mxu0 %v1942
        %2009 = vmatpush.bf16.msra.mxu0 %v1940
        %2010 = vmatmul.bf16.gmra.mxu0 %v1789
        %v2011 = vpop.f32.mrf.mxu0
        %v2012 = vadd.f32 %v1998, %v2011
        %v2013 = vpop.f32.mrf.mxu0
        %v2014 = vadd.f32 %v2000, %v2013
        %2015 = vdwg.mxu0
        %2016 = vmatpush.bf16.msra.mxu0 %v1939
        %2017 = vmatpush.bf16.msra.mxu0 %v1937
        %2018 = vmatpush.bf16.msra.mxu0 %v1935
        %2019 = vmatpush.bf16.msra.mxu0 %v1933
        %2020 = vmatpush.bf16.msra.mxu0 %v1931
        %2021 = vmatpush.bf16.msra.mxu0 %v1929
        %2022 = vmatpush.bf16.msra.mxu0 %v1927
        %2023 = vmatpush.bf16.msra.mxu0 %v1925
        %2024 = vmatmul.bf16.gmra.mxu0 %v1788
        %v2025 = vpop.f32.mrf.mxu0
        %v2026 = vadd.f32 %v1825, %v2025
        %v2027 = vpop.f32.mrf.mxu0
        %v2028 = vadd.f32 %v1825, %v2027
        %2029 = vdwg.mxu0
        %2030 = vmatpush.bf16.msra.mxu0 %v1955
        %2031 = vmatpush.bf16.msra.mxu0 %v1953
        %2032 = vmatpush.bf16.msra.mxu0 %v1951
        %2033 = vmatpush.bf16.msra.mxu0 %v1949
        %2034 = vmatpush.bf16.msra.mxu0 %v1947
        %2035 = vmatpush.bf16.msra.mxu0 %v1945
        %2036 = vmatpush.bf16.msra.mxu0 %v1943
        %2037 = vmatpush.bf16.msra.mxu0 %v1941
        %2038 = vmatmul.bf16.gmra.mxu0 %v1789
        %v2039 = vpop.f32.mrf.mxu0
        %v2040 = vadd.f32 %v2026, %v2039
        %v2041 = vpop.f32.mrf.mxu0
        %v2042 = vadd.f32 %v2028, %v2041
        %2043 = vdwg.mxu0
        %v2044 = vmax.f32 %v2012, 0.0
        %v2045 = vmax.f32 %v2040, 0.0
        %v2046 = vmax.f32 %v2014, 0.0
        %v2047 = vmax.f32 %v2042, 0.0
        %v2048 = vpack.c.bf16 %v2045, %v2044
        %v2049 = vpack.c.bf16 %v2047, %v2046
        %v2050 = vld [vmem:[%s7] sm:$0xf]
        %v2051 = vld [vmem:[%s7 + $0x4] sm:$0xf]
        %v2052 = vld [vmem:[%s8] sm:$0x1]
        %v2054 = vperm.slane %v2052, 0
        %v2058 = vunpack.c.h.b16 %v2048
        %v2059 = vunpack.c.h.b16 %v2049
        %v2060 = vpack.c.b16 %v2059, %v2058
        %v2063 = vunpack.c.l.b16 %v2050
        %v2064 = vunpack.c.l.b16 %v2051
        %v2065 = vpack.c.b16 %v2064, %v2063
        %vm2067 = vcmask 130048
        %v2069 = vsel %vm2067, %v2060, 0
        %2071 = vmatpush.bf16.msra.mxu0 0
        %2072 = vmatpush.bf16.msra.mxu0 0
        %2073 = vmatpush.bf16.msra.mxu0 0
        %2074 = vmatpush.bf16.msra.mxu0 0
        %2075 = vmatpush.bf16.msra.mxu0 0
        %2076 = vmatpush.bf16.msra.mxu0 0
        %2077 = vmatpush.bf16.msra.mxu0 0
        %2078 = vmatpush.bf16.msra.mxu0 %v2065
        %2079 = vmatmul.bf16.gmra.mxu0 %v2069
        %v2080 = vpop.f32.mrf.mxu0
        %v2081 = vadd.f32 %v2054, %v2080
        %v2082 = vpop.f32.mrf.mxu0
        %v2083 = vadd.f32 %v2054, %v2082
        %2084 = vdwg.mxu0
        %vm2085 = vcmp.ge.f32.partialorder %v2081, 0.0
        %vm2086 = vcmp.ge.f32.partialorder %v2083, 0.0
        %v2087 = vmul.f32 %v2081, 0.01
        %v2088 = vmul.f32 %v2083, 0.01
        %v2089 = vsel %vm2085, %v2081, %v2087
        %v2090 = vsel %vm2086, %v2083, %v2088
        %v2091 = vld [vmem:[%s9] sm:$0x1]
        %v2093 = vperm.slane %v2091, 0
        %v2095 = vsub.f32 %v2089, %v2093
        %v2096 = vsub.f32 %v2090, %v2093
        %v2097 = vld [vmem:[%s10] sm:$0xf]
        %v2098 = vld [vmem:[%s10 + $0x4] sm:$0xf]
        %v2099 = vld [vmem:[%s10 + $0x8] sm:$0xf]
        %v2100 = vld [vmem:[%s10 + $0xc] sm:$0xf]
        %v2101 = vld [vmem:[%s10 + $0x10] sm:$0xf]
        %v2102 = vld [vmem:[%s10 + $0x14] sm:$0xf]
        %v2103 = vld [vmem:[%s10 + $0x18] sm:$0xf]
        %v2104 = vld [vmem:[%s10 + $0x1c] sm:$0xf]
        %v2105 = vld [vmem:[%s10 + $0x20] sm:$0xf]
        %v2106 = vld [vmem:[%s10 + $0x24] sm:$0xf]
        %v2107 = vld [vmem:[%s10 + $0x28] sm:$0xf]
        %v2108 = vld [vmem:[%s10 + $0x2c] sm:$0xf]
        %v2109 = vld [vmem:[%s10 + $0x30] sm:$0xf]
        %v2110 = vld [vmem:[%s10 + $0x34] sm:$0xf]
        %v2111 = vld [vmem:[%s10 + $0x38] sm:$0xf]
        %v2112 = vld [vmem:[%s10 + $0x3c] sm:$0xf]
        %v2113 = vld [vmem:[%s11] sm:$0x1]
        %v2115 = vperm.slane %v2113, 0
        %v2117 = vunpack.c.l.b16 %v2048
        %v2118 = vunpack.c.l.b16 %v2049
        %v2119 = vpack.c.b16 %v2118, %v2117
        %v2137 = vunpack.c.l.b16 %v2097
        %v2138 = vunpack.c.l.b16 %v2098
        %v2139 = vunpack.c.l.b16 %v2099
        %v2140 = vunpack.c.l.b16 %v2100
        %v2141 = vunpack.c.l.b16 %v2101
        %v2142 = vunpack.c.l.b16 %v2102
        %v2143 = vunpack.c.l.b16 %v2103
        %v2144 = vunpack.c.l.b16 %v2104
        %v2145 = vunpack.c.l.b16 %v2105
        %v2146 = vunpack.c.l.b16 %v2106
        %v2147 = vunpack.c.l.b16 %v2107
        %v2148 = vunpack.c.l.b16 %v2108
        %v2149 = vunpack.c.l.b16 %v2109
        %v2150 = vunpack.c.l.b16 %v2110
        %v2151 = vunpack.c.l.b16 %v2111
        %v2152 = vunpack.c.l.b16 %v2112
        %v2153 = vpack.c.b16 %v2138, %v2137
        %v2154 = vpack.c.b16 %v2140, %v2139
        %v2155 = vpack.c.b16 %v2142, %v2141
        %v2156 = vpack.c.b16 %v2144, %v2143
        %v2157 = vpack.c.b16 %v2146, %v2145
        %v2158 = vpack.c.b16 %v2148, %v2147
        %v2159 = vpack.c.b16 %v2150, %v2149
        %v2160 = vpack.c.b16 %v2152, %v2151
        %2169 = vmatpush.bf16.msra.mxu0 %v2160
        %2170 = vmatpush.bf16.msra.mxu0 %v2159
        %2171 = vmatpush.bf16.msra.mxu0 %v2158
        %2172 = vmatpush.bf16.msra.mxu0 %v2157
        %2173 = vmatpush.bf16.msra.mxu0 %v2156
        %2174 = vmatpush.bf16.msra.mxu0 %v2155
        %2175 = vmatpush.bf16.msra.mxu0 %v2154
        %2176 = vmatpush.bf16.msra.mxu0 %v2153
        %2177 = vmatmul.bf16.gmra.mxu0 %v2119
        %v2178 = vpop.f32.mrf.mxu0
        %v2179 = vadd.f32 %v2115, %v2178
        %v2180 = vpop.f32.mrf.mxu0
        %v2181 = vadd.f32 %v2115, %v2180
        %2182 = vdwg.mxu0
        %v2183 = vmax.f32 %v2179, 0.0
        %v2184 = vmax.f32 %v2181, 0.0
        %v2185 = vpack.c.bf16 %v2184, %v2183
        %v2186 = vld [vmem:[%s12] sm:$0xf]
        %v2187 = vld [vmem:[%s12 + $0x4] sm:$0xf]
        %v2188 = vld [vmem:[%s12 + $0x8] sm:$0xf]
        %v2189 = vld [vmem:[%s12 + $0xc] sm:$0xf]
        %v2190 = vld [vmem:[%s12 + $0x10] sm:$0xf]
        %v2191 = vld [vmem:[%s12 + $0x14] sm:$0xf]
        %v2192 = vld [vmem:[%s12 + $0x18] sm:$0xf]
        %v2193 = vld [vmem:[%s12 + $0x1c] sm:$0xf]
        %v2194 = vld [vmem:[%s13] sm:$0x1]
        %v2196 = vperm.slane %v2194, 0
        %v2206 = vunpack.c.l.b16 %v2186
        %v2207 = vunpack.c.l.b16 %v2187
        %v2208 = vunpack.c.l.b16 %v2188
        %v2209 = vunpack.c.l.b16 %v2189
        %v2210 = vunpack.c.l.b16 %v2190
        %v2211 = vunpack.c.l.b16 %v2191
        %v2212 = vunpack.c.l.b16 %v2192
        %v2213 = vunpack.c.l.b16 %v2193
        %v2214 = vpack.c.b16 %v2207, %v2206
        %v2215 = vpack.c.b16 %v2209, %v2208
        %v2216 = vpack.c.b16 %v2211, %v2210
        %v2217 = vpack.c.b16 %v2213, %v2212
        %vm2222 = vcmask 523264
        %v2224 = vsel %vm2222, %v2185, 0
        %2226 = vmatpush.bf16.msra.mxu0 0
        %2227 = vmatpush.bf16.msra.mxu0 0
        %2228 = vmatpush.bf16.msra.mxu0 0
        %2229 = vmatpush.bf16.msra.mxu0 0
        %2230 = vmatpush.bf16.msra.mxu0 %v2217
        %2231 = vmatpush.bf16.msra.mxu0 %v2216
        %2232 = vmatpush.bf16.msra.mxu0 %v2215
        %2233 = vmatpush.bf16.msra.mxu0 %v2214
        %2234 = vmatmul.bf16.gmra.mxu0 %v2224
        %v2235 = vpop.f32.mrf.mxu0
        %v2236 = vadd.f32 %v2196, %v2235
        %v2237 = vpop.f32.mrf.mxu0
        %v2238 = vadd.f32 %v2196, %v2237
        %2239 = vdwg.mxu0
        %vm2240 = vcmp.ge.f32.partialorder %v2236, 0.0
        %vm2241 = vcmp.ge.f32.partialorder %v2238, 0.0
        %v2242 = vmul.f32 %v2236, 0.01
        %v2243 = vmul.f32 %v2238, 0.01
        %v2244 = vsel %vm2240, %v2236, %v2242
        %v2245 = vsel %vm2241, %v2238, %v2243
        %vm2246 = vcmask 416768
        %v2247 = vsel %vm2246, %v2244, 0.0
        %2248 = vadd.xlane.f32.xlu0 %v2247
        %v2249 = vpop.xlane.xlu0 %2248
        %v2250 = vsel %vm2246, %v2245, 0.0
        %2251 = vadd.xlane.f32.xlu0 %v2250
        %v2252 = vpop.xlane.xlu0 %2251
        %v2253 = vadd.f32 %v2249, 1e-08
        %v2254 = vadd.f32 %v2252, 1e-08
        %v2255 = vrcp.pop %v2253
        %v2256 = vrcp.pop %v2254
        %v2257 = vmul.f32 %v2244, %v2255
        %v2258 = vmul.f32 %v2245, %v2256
        %2261 = vrot.lane.b32.xlu0 %v2257, 2
        %v2262 = vpop.permute.xlu0 %2261
        %2263 = vrot.lane.b32.xlu0 %v2258, 2
        %v2264 = vpop.permute.xlu0 %2263
        %vm2267 = vcmask 15360
        %v2268 = vsel %vm2267, %v2095, %v2262
        %v2269 = vsel %vm2267, %v2096, %v2264
        %vm2270 = vcmask 433152
        %v2271 = vsel %vm2270, %v2268, 0.0
        %v2272 = vsel %vm2270, %v2269, 0.0
        %2273 = vst [vmem:[%s497] sm:$0xff] %v2271
        %2274 = vst [vmem:[%s497 + $0x8] sm:$0xff] %v2272
        %s2275 = sand.u32 %s337, 1
        %s2276 = scalar_lea.sflag [#allocation4], %s2275
        %s2277 = sand.u32 %s337, 1
        %s2278 = smul.addr %s2277, 16
        %s2279 = scalar_lea.vmem [#allocation7], %s2278
        // Predicated region
        $region85: #{tpu_custom_call.1} parent=75 // pred_check
          %p2280 = pneg %p347
        $region86: #{tpu_custom_call.1} parent=75 // pred_check_branch
          %2282 = sbr.rel (%p2280) target = $region88
        $region87: #{tpu_custom_call.1} parent=75 // pred_region
          %s2283 = smul.u32 2, %s30
          %2285 = vsyncadd %s2276, 0
          %s2286 = smul.addr %s2283, 8
          %s2287 = scalar_lea.hbm %s14, %s2286
          %s2288 = sshll.u32 %s2279, 4
          %s2289 = int_to_ptr.vmem [resolvable:$true] %s2288
          %s2290 = sshll.u32 %s2287, 4
          %s2291 = int_to_ptr.hbm [resolvable:$true] %s2290
          %2296 = dma.vmem_to_hbm [thread:$0]  %s2289, 256, %s2291, %s2276, 128, 128, 8
        $region88: #{tpu_custom_call.1} parent=75 // pred_fallthru
          _
      $region76: #{tpu_custom_call.1} parent=5 // pred_fallthru
        _
      %p2297 = scmp.le.s32.totalorder 2, %s25
      // Predicated region
      $region89: #{tpu_custom_call.1} parent=5 // pred_check
        %p2298 = pneg %p2297
      $region90: #{tpu_custom_call.1} parent=5 // pred_check_branch
        %2300 = sbr.rel (%p2298) target = $region92
      $region91: #{tpu_custom_call.1} parent=5 // pred_region
        %s2301 = ssub.s32 %s25, 2
        // Predicated region
        $region93: #{tpu_custom_call.1} parent=91 // pred_check
          %p2302 = pneg %p353
        $region94: #{tpu_custom_call.1} parent=91 // pred_check_branch
          %2304 = sbr.rel (%p2302) target = $region96
        $region95: #{tpu_custom_call.1} parent=91 // pred_region
          %s2305 = sand.u32 %s338, 1
          %s2306 = scalar_lea.sflag [#allocation4], %s2305
          %s2307 = sand.u32 %s338, 1
          %s2308 = smul.addr %s2307, 16
          %s2309 = scalar_lea.vmem [#allocation7], %s2308
          %2311 = dma.done %s2306, 256
        $region96: #{tpu_custom_call.1} parent=91 // pred_fallthru
          _
      $region92: #{tpu_custom_call.1} parent=5 // pred_fallthru
        _
    $region6: #{tpu_custom_call.1} parent=1 // loop_footer
      %s29 = sadd.s32 1, %s25
    $region7: #{tpu_custom_call.1} parent=1 // loop_footer_branch
      %24 = sbr.rel target = $region3
    $region8: #{tpu_custom_call.1} parent=1 // loop_exit
      _
    %2312 = vsyncpa [#allocation3], 1
    %s2313 = scalar_lea.sflag [#allocation3], 1
    %2314 = vsyncpa %s2313, 1
    %2315 = vsyncpa [#allocation6], 1
    %2316 = vsyncpa [#allocation4], 1
    %s2317 = scalar_lea.sflag [#allocation4], 1
    %2318 = vsyncpa %s2317, 1

</llo_original>
